<compile_context>
chip_gen: v6e
topology: v6e:2x2x1
jax: 0.10.0
libtpu: 0.0.40
codegen_flags: <defaults>
</compile_context>

<pallas_src>
import math
from functools import partial

import jax
import jax.numpy as jnp
from jax.experimental import pallas as pl
from jax.experimental.pallas import tpu as pltpu


# ----------------------------------------------------------------------------
# Pallas kernel: one MultiScaleTransformer layer for one batch element
# ----------------------------------------------------------------------------
def _mst_kernel(x_ref, mbias_ref,
                wq_ref, bq_ref, wk_ref, bk_ref, wv_ref, bv_ref,
                sw1_ref, sb1_ref, sw2_ref, sb2_ref,
                ln1g_ref, ln1b_ref,
                f1w_ref, f1b_ref, f2w_ref, f2b_ref,
                ln2g_ref, ln2b_ref,
                out_ref, attn_ref,
                msg_scr, *, num_heads):
    x = x_ref[0]            # (Nf, D)
    mbias = mbias_ref[0]    # (Nf, Nf)  fused: where(knn_mask, attn_bias, -1e12)
    Nf, D = x.shape
    dk = D // num_heads
    inv_sqrt_dk = 1.0 / math.sqrt(dk)

    def linear(inp, w_ref, b_ref):
        return jnp.dot(inp, w_ref[...], preferred_element_type=jnp.float32) + b_ref[...]

    def layer_norm(z, g_ref, b_ref, eps):
        mu = jnp.mean(z, axis=-1, keepdims=True)
        var = jnp.mean(jnp.square(z - mu), axis=-1, keepdims=True)
        return (z - mu) * jax.lax.rsqrt(var + eps) * g_ref[...] + b_ref[...]

    # --- MultiScaleAttention ---
    q = linear(x, wq_ref, bq_ref)
    k = linear(x, wk_ref, bk_ref)
    v = linear(x, wv_ref, bv_ref)

    for h in range(num_heads):
        sl = slice(h * dk, (h + 1) * dk)
        qh, kh, vh = q[:, sl], k[:, sl], v[:, sl]
        # scores = q @ k^T / sqrt(d_k) + masked_bias   (mask already folded into the bias)
        s = jax.lax.dot_general(qh, kh, (((1,), (1,)), ((), ())),
                                preferred_element_type=jnp.float32)
        s = s * inv_sqrt_dk + mbias
        s = s - jnp.max(s, axis=-1, keepdims=True)       # numerically-stable softmax
        p = jnp.exp(s)
        # reciprocal on the EUP slot (approx); exact divide would be p / sum(p)
        p = p * pl.reciprocal(jnp.sum(p, axis=-1, keepdims=True), approx=True)
        attn_ref[0, h] = p                               # attention weights output (dropout = id)
        # write the head's AV result straight into its lane slice (no concatenate)
        msg_scr[:, sl] = jnp.dot(p, vh, preferred_element_type=jnp.float32)

    msg = msg_scr[...]                                   # (Nf, D) heads re-merged

    # scale_linear: Linear -> SiLU -> Dropout(id) -> Linear, + residual, LayerNorm(eps=1e-6)
    h1 = linear(msg, sw1_ref, sb1_ref)
    h1 = h1 * jax.nn.sigmoid(h1)                         # SiLU
    h2 = linear(h1, sw2_ref, sb2_ref)
    attn_out = layer_norm(h2 + x, ln1g_ref, ln1b_ref, 1e-6)

    # PositionWiseFeedForward: fc1 -> GELU -> fc2 -> + residual -> LayerNorm(eps=1e-6)
    f = linear(attn_out, f1w_ref, f1b_ref)
    # TODO(synk): PyTorch nn.GELU() is exact (erf-based); tanh approximation used here because
    # erf lowering is not guaranteed in Mosaic.
    f = jax.nn.gelu(f, approximate=True)
    f = linear(f, f2w_ref, f2b_ref)
    out_ref[0] = layer_norm(f + attn_out, ln2g_ref, ln2b_ref, 1e-6)


_PARAM_ORDER = ("wq", "bq", "wk", "bk", "wv", "bv",
                "sw1", "sb1", "sw2", "sb2",
                "ln1g", "ln1b",
                "f1w", "f1b", "f2w", "f2b",
                "ln2g", "ln2b")


# ----------------------------------------------------------------------------
# Plain-JAX glue: kNN mask (torch.topk equivalent) + bias/mask fusion + pallas_call wrapper
# ----------------------------------------------------------------------------
def build_knn_mask(dist, n_full, knn_ratio):
    """kNN mask construction from MultiScaleAttention.forward (use_super_node=True)."""
    B, N, _ = dist.shape
    assert N + 1 == n_full, "x must carry a super node: N_full == dist.shape[-1] + 1"
    d2 = jnp.ones((B, n_full, n_full), dist.dtype)
    d2 = d2.at[:, 1:, 1:].set(dist)
    d2 = d2.at[:, 0, :].set(0.0)
    d2 = d2.at[:, :, 0].set(0.0)
    k_nn = max(1, int(knn_ratio * n_full))
    _, idx = jax.lax.top_k(-d2, k_nn)               # indices of the k smallest distances per row
    mask = jnp.zeros((B, n_full, n_full), bool)
    b_ix = jnp.arange(B)[:, None, None]
    n_ix = jnp.arange(n_full)[None, :, None]
    mask = mask.at[b_ix, n_ix, idx].set(True)
    mask = mask.at[:, 0, :].set(True)
    mask = mask.at[:, :, 0].set(True)
    return mask


def multi_scale_transformer_forward(params, x, dist, attn_mask=None, attn_bias=None,
                                    dist_embed=None, *, num_heads, knn_ratio=0.3):
    """Equivalent of MultiScaleTransformer.forward(x, dist, attn_mask, attn_bias, dist_embed).

    Returns (out, attn) with out: (B, Nf, D), attn: (B, H, 1, Nf, Nf).
    `attn_mask` and `dist_embed` are accepted but unused — the reference forward never reads them.
    """
    del attn_mask, dist_embed
    B, Nf, D = x.shape
    H = num_heads

    # Fuse the kNN mask and the additive attention bias into one O(Nf^2) tensor.
    mask = build_knn_mask(dist, Nf, knn_ratio)
    if attn_bias is None:
        bias = jnp.zeros((B, Nf, Nf), jnp.float32)
    else:
        bias = attn_bias.reshape(B, Nf, Nf).astype(jnp.float32)   # head-shared bias
    masked_bias = jnp.where(mask, bias, jnp.float32(-1e12))

    weights = [params[name] for name in _PARAM_ORDER]
    in_specs = ([pl.BlockSpec((1, Nf, D), lambda b: (b, 0, 0)),
                 pl.BlockSpec((1, Nf, Nf), lambda b: (b, 0, 0))] +
                [pl.BlockSpec(w.shape, lambda b: (0, 0)) for w in weights])

    out, attn = pl.pallas_call(
        partial(_mst_kernel, num_heads=H),
        out_shape=(jax.ShapeDtypeStruct((B, Nf, D), jnp.float32),
                   jax.ShapeDtypeStruct((B, H, Nf, Nf), jnp.float32)),
        grid=(B,),
        in_specs=in_specs,
        out_specs=(pl.BlockSpec((1, Nf, D), lambda b: (b, 0, 0)),
                   pl.BlockSpec((1, H, Nf, Nf), lambda b: (b, 0, 0, 0))),
        scratch_shapes=[pltpu.VMEM((Nf, D), jnp.float32)],
        compiler_params=pltpu.CompilerParams(dimension_semantics=("parallel",)),
    )(x, masked_bias, *weights)

    # match the reference attn shape (B, H, 1, N_full, N_full)
    return out, attn.reshape(B, H, 1, Nf, Nf)


# ----------------------------------------------------------------------------
# Deterministic synthetic parameters (shapes follow the module __init__)
# ----------------------------------------------------------------------------
def init_params(key, hidden_dim, ffn_hidden_dim):
    D, Fd = hidden_dim, ffn_hidden_dim
    kit = iter(jax.random.split(key, 64))

    def nrm(shape, scale=0.1):
        return scale * jax.random.normal(next(kit), shape, jnp.float32)

    return dict(
        wq=nrm((D, D)), bq=nrm((1, D), 0.01),
        wk=nrm((D, D)), bk=nrm((1, D), 0.01),
        wv=nrm((D, D)), bv=nrm((1, D), 0.01),
        sw1=nrm((D, D)), sb1=nrm((1, D), 0.01),
        sw2=nrm((D, D)), sb2=nrm((1, D), 0.01),
        ln1g=jnp.ones((1, D), jnp.float32), ln1b=jnp.zeros((1, D), jnp.float32),
        f1w=nrm((D, Fd)), f1b=nrm((1, Fd), 0.01),
        f2w=nrm((Fd, D)), f2b=nrm((1, D), 0.01),
        ln2g=jnp.ones((1, D), jnp.float32), ln2b=jnp.zeros((1, D), jnp.float32),
    )


# ----------------------------------------------------------------------------
if __name__ == "__main__":
    B, N, D, H, Fd = 2, 8, 32, 4, 64
    Nf = N + 1                      # + super node (use_super_node=True)
    knn_ratio = 0.3

    key = jax.random.PRNGKey(0)
    kp, kx, kd, kb = jax.random.split(key, 4)
    params = init_params(kp, D, Fd)

    x = 0.1 * jax.random.normal(kx, (B, Nf, D), jnp.float32)
    dist = jnp.abs(jax.random.normal(kd, (B, N, N), jnp.float32))
    dist = 0.5 * (dist + jnp.swapaxes(dist, 1, 2))          # symmetric pairwise distances
    attn_bias = 0.1 * jax.random.normal(kb, (B, Nf, Nf), jnp.float32)
    attn_mask = jnp.ones((B, Nf, Nf), bool)                 # passed but unused (as in the reference)

    fwd = jax.jit(partial(multi_scale_transformer_forward, num_heads=H, knn_ratio=knn_ratio))
    out, attn = fwd(params, x, dist, attn_mask, attn_bias)
    jax.block_until_ready((out, attn))

    assert out.shape == (B, Nf, D)
    assert attn.shape == (B, H, 1, Nf, Nf)
    assert bool(jnp.all(jnp.isfinite(out)))
    assert bool(jnp.all(jnp.isfinite(attn)))
    print("KERNEL_OK")
</pallas_src>

<mosaic_0001>
module attributes {stable_mosaic.version = 11 : i64} {
  func.func @_mst_kernel(%arg0: i32, %arg1: memref<1x9x32xf32, #tpu.memory_space<vmem>>, %arg2: memref<1x9x9xf32, #tpu.memory_space<vmem>>, %arg3: memref<32x32xf32, #tpu.memory_space<vmem>>, %arg4: memref<1x32xf32, #tpu.memory_space<vmem>>, %arg5: memref<32x32xf32, #tpu.memory_space<vmem>>, %arg6: memref<1x32xf32, #tpu.memory_space<vmem>>, %arg7: memref<32x32xf32, #tpu.memory_space<vmem>>, %arg8: memref<1x32xf32, #tpu.memory_space<vmem>>, %arg9: memref<32x32xf32, #tpu.memory_space<vmem>>, %arg10: memref<1x32xf32, #tpu.memory_space<vmem>>, %arg11: memref<32x32xf32, #tpu.memory_space<vmem>>, %arg12: memref<1x32xf32, #tpu.memory_space<vmem>>, %arg13: memref<1x32xf32, #tpu.memory_space<vmem>>, %arg14: memref<1x32xf32, #tpu.memory_space<vmem>>, %arg15: memref<32x64xf32, #tpu.memory_space<vmem>>, %arg16: memref<1x64xf32, #tpu.memory_space<vmem>>, %arg17: memref<64x32xf32, #tpu.memory_space<vmem>>, %arg18: memref<1x32xf32, #tpu.memory_space<vmem>>, %arg19: memref<1x32xf32, #tpu.memory_space<vmem>>, %arg20: memref<1x32xf32, #tpu.memory_space<vmem>>, %arg21: memref<1x9x32xf32, #tpu.memory_space<vmem>>, %arg22: memref<1x4x9x9xf32, #tpu.memory_space<vmem>>, %arg23: memref<9x32xf32, #tpu.memory_space<vmem>>) attributes {dimension_semantics = [#tpu.dimension_semantics<parallel>], iteration_bounds = array<i64: 2>, scalar_prefetch = 0 : i64, scratch_operands = 1 : i64, tpu.core_type = #tpu.core_type<tc>, window_params = [{transform_indices = @transform_0, window_bounds = array<i64: 1, 9, 32>}, {transform_indices = @transform_1, window_bounds = array<i64: 1, 9, 9>}, {pipeline_mode = #tpu.pipeline_mode<synchronous>, transform_indices = @transform_2, window_bounds = array<i64: 32, 32>}, {pipeline_mode = #tpu.pipeline_mode<synchronous>, transform_indices = @transform_3, window_bounds = array<i64: 1, 32>}, {pipeline_mode = #tpu.pipeline_mode<synchronous>, transform_indices = @transform_4, window_bounds = array<i64: 32, 32>}, {pipeline_mode = #tpu.pipeline_mode<synchronous>, transform_indices = @transform_5, window_bounds = array<i64: 1, 32>}, {pipeline_mode = #tpu.pipeline_mode<synchronous>, transform_indices = @transform_6, window_bounds = array<i64: 32, 32>}, {pipeline_mode = #tpu.pipeline_mode<synchronous>, transform_indices = @transform_7, window_bounds = array<i64: 1, 32>}, {pipeline_mode = #tpu.pipeline_mode<synchronous>, transform_indices = @transform_8, window_bounds = array<i64: 32, 32>}, {pipeline_mode = #tpu.pipeline_mode<synchronous>, transform_indices = @transform_9, window_bounds = array<i64: 1, 32>}, {pipeline_mode = #tpu.pipeline_mode<synchronous>, transform_indices = @transform_10, window_bounds = array<i64: 32, 32>}, {pipeline_mode = #tpu.pipeline_mode<synchronous>, transform_indices = @transform_11, window_bounds = array<i64: 1, 32>}, {pipeline_mode = #tpu.pipeline_mode<synchronous>, transform_indices = @transform_12, window_bounds = array<i64: 1, 32>}, {pipeline_mode = #tpu.pipeline_mode<synchronous>, transform_indices = @transform_13, window_bounds = array<i64: 1, 32>}, {pipeline_mode = #tpu.pipeline_mode<synchronous>, transform_indices = @transform_14, window_bounds = array<i64: 32, 64>}, {pipeline_mode = #tpu.pipeline_mode<synchronous>, transform_indices = @transform_15, window_bounds = array<i64: 1, 64>}, {pipeline_mode = #tpu.pipeline_mode<synchronous>, transform_indices = @transform_16, window_bounds = array<i64: 64, 32>}, {pipeline_mode = #tpu.pipeline_mode<synchronous>, transform_indices = @transform_17, window_bounds = array<i64: 1, 32>}, {pipeline_mode = #tpu.pipeline_mode<synchronous>, transform_indices = @transform_18, window_bounds = array<i64: 1, 32>}, {pipeline_mode = #tpu.pipeline_mode<synchronous>, transform_indices = @transform_19, window_bounds = array<i64: 1, 32>}, {transform_indices = @transform_20, window_bounds = array<i64: 1, 9, 32>}, {transform_indices = @transform_21, window_bounds = array<i64: 1, 4, 9, 9>}]} {
    %c0 = arith.constant 0 : index
    %c0_0 = arith.constant 0 : index
    %c0_1 = arith.constant 0 : index
    %0 = vector.load %arg1[%c0, %c0_0, %c0_1] : memref<1x9x32xf32, #tpu.memory_space<vmem>>, vector<1x9x32xf32>
    %1 = vector.shape_cast %0 : vector<1x9x32xf32> to vector<9x32xf32>
    %c0_2 = arith.constant 0 : index
    %c0_3 = arith.constant 0 : index
    %c0_4 = arith.constant 0 : index
    %2 = vector.load %arg2[%c0_2, %c0_3, %c0_4] : memref<1x9x9xf32, #tpu.memory_space<vmem>>, vector<1x9x9xf32>
    %3 = vector.shape_cast %2 : vector<1x9x9xf32> to vector<9x9xf32>
    %c0_5 = arith.constant 0 : index
    %c0_6 = arith.constant 0 : index
    %4 = vector.load %arg3[%c0_5, %c0_6] : memref<32x32xf32, #tpu.memory_space<vmem>>, vector<32x32xf32>
    %cst = arith.constant dense<0.000000e+00> : vector<9x32xf32>
    %5 = tpu.matmul %1, %4, %cst {dimension_numbers = #tpu.dot_dimension_numbers<[1], [0], [0], [1], [0, 0, 1, 1], [], []>} : vector<9x32xf32>, vector<32x32xf32>, vector<9x32xf32> -> vector<9x32xf32>
    %c0_7 = arith.constant 0 : index
    %c0_8 = arith.constant 0 : index
    %6 = vector.load %arg4[%c0_7, %c0_8] : memref<1x32xf32, #tpu.memory_space<vmem>>, vector<1x32xf32>
    %7 = vector.broadcast %6 : vector<1x32xf32> to vector<9x32xf32>
    %8 = arith.addf %5, %7 : vector<9x32xf32>
    %c0_9 = arith.constant 0 : index
    %c0_10 = arith.constant 0 : index
    %9 = vector.load %arg5[%c0_9, %c0_10] : memref<32x32xf32, #tpu.memory_space<vmem>>, vector<32x32xf32>
    %cst_11 = arith.constant dense<0.000000e+00> : vector<9x32xf32>
    %10 = tpu.matmul %1, %9, %cst_11 {dimension_numbers = #tpu.dot_dimension_numbers<[1], [0], [0], [1], [0, 0, 1, 1], [], []>} : vector<9x32xf32>, vector<32x32xf32>, vector<9x32xf32> -> vector<9x32xf32>
    %c0_12 = arith.constant 0 : index
    %c0_13 = arith.constant 0 : index
    %11 = vector.load %arg6[%c0_12, %c0_13] : memref<1x32xf32, #tpu.memory_space<vmem>>, vector<1x32xf32>
    %12 = vector.broadcast %11 : vector<1x32xf32> to vector<9x32xf32>
    %13 = arith.addf %10, %12 : vector<9x32xf32>
    %c0_14 = arith.constant 0 : index
    %c0_15 = arith.constant 0 : index
    %14 = vector.load %arg7[%c0_14, %c0_15] : memref<32x32xf32, #tpu.memory_space<vmem>>, vector<32x32xf32>
    %cst_16 = arith.constant dense<0.000000e+00> : vector<9x32xf32>
    %15 = tpu.matmul %1, %14, %cst_16 {dimension_numbers = #tpu.dot_dimension_numbers<[1], [0], [0], [1], [0, 0, 1, 1], [], []>} : vector<9x32xf32>, vector<32x32xf32>, vector<9x32xf32> -> vector<9x32xf32>
    %c0_17 = arith.constant 0 : index
    %c0_18 = arith.constant 0 : index
    %16 = vector.load %arg8[%c0_17, %c0_18] : memref<1x32xf32, #tpu.memory_space<vmem>>, vector<1x32xf32>
    %17 = vector.broadcast %16 : vector<1x32xf32> to vector<9x32xf32>
    %18 = arith.addf %15, %17 : vector<9x32xf32>
    %19 = vector.extract_strided_slice %8 {offsets = [0, 0], sizes = [9, 8], strides = [1, 1]} : vector<9x32xf32> to vector<9x8xf32>
    %20 = vector.extract_strided_slice %13 {offsets = [0, 0], sizes = [9, 8], strides = [1, 1]} : vector<9x32xf32> to vector<9x8xf32>
    %21 = vector.extract_strided_slice %18 {offsets = [0, 0], sizes = [9, 8], strides = [1, 1]} : vector<9x32xf32> to vector<9x8xf32>
    %cst_19 = arith.constant dense<0.000000e+00> : vector<9x9xf32>
    %22 = tpu.matmul %19, %20, %cst_19 {dimension_numbers = #tpu.dot_dimension_numbers<[1], [1], [0], [0], [0, 0, 1, 0], [], []>} : vector<9x8xf32>, vector<9x8xf32>, vector<9x9xf32> -> vector<9x9xf32>
    %cst_20 = arith.constant 0.353553385 : f32
    %23 = vector.broadcast %cst_20 : f32 to vector<9x9xf32>
    %24 = arith.mulf %22, %23 : vector<9x9xf32>
    %25 = arith.addf %24, %3 : vector<9x9xf32>
    %cst_21 = arith.constant dense<0xFF800000> : vector<9xf32>
    %26 = vector.multi_reduction <maximumf>, %25, %cst_21 [1] : vector<9x9xf32> to vector<9xf32>
    %27 = vector.shape_cast %26 : vector<9xf32> to vector<9x1xf32>
    %28 = vector.broadcast %27 : vector<9x1xf32> to vector<9x9xf32>
    %29 = arith.subf %25, %28 : vector<9x9xf32>
    %30 = math.exp %29 : vector<9x9xf32>
    %cst_22 = arith.constant dense<0.000000e+00> : vector<9xf32>
    %31 = vector.multi_reduction <add>, %30, %cst_22 [1] : vector<9x9xf32> to vector<9xf32>
    %32 = vector.shape_cast %31 : vector<9xf32> to vector<9x1xf32>
    %33 = tpu.reciprocal %32 {approx = true} : vector<9x1xf32> -> vector<9x1xf32>
    %34 = vector.broadcast %33 : vector<9x1xf32> to vector<9x9xf32>
    %35 = arith.mulf %30, %34 : vector<9x9xf32>
    %c0_23 = arith.constant 0 : index
    %c0_24 = arith.constant 0 : index
    %c0_25 = arith.constant 0 : index
    %c0_26 = arith.constant 0 : index
    %36 = vector.load %arg22[%c0_23, %c0_24, %c0_25, %c0_26] : memref<1x4x9x9xf32, #tpu.memory_space<vmem>>, vector<1x1x9x9xf32>
    %37 = vector.shape_cast %36 : vector<1x1x9x9xf32> to vector<9x9xf32>
    %38 = vector.shape_cast %35 : vector<9x9xf32> to vector<1x1x9x9xf32>
    tpu.vector_store %arg22[%c0_23, %c0_24, %c0_25, %c0_26], %38 {strides = array<i32>} : memref<1x4x9x9xf32, #tpu.memory_space<vmem>>, vector<1x1x9x9xf32>,
    %cst_27 = arith.constant dense<0.000000e+00> : vector<9x8xf32>
    %39 = tpu.matmul %35, %21, %cst_27 {dimension_numbers = #tpu.dot_dimension_numbers<[1], [0], [0], [1], [0, 0, 1, 1], [], []>} : vector<9x9xf32>, vector<9x8xf32>, vector<9x8xf32> -> vector<9x8xf32>
    %c0_28 = arith.constant 0 : index
    %c0_29 = arith.constant 0 : index
    %40 = vector.load %arg23[%c0_28, %c0_29] : memref<9x32xf32, #tpu.memory_space<vmem>>, vector<9x8xf32>
    tpu.vector_store %arg23[%c0_28, %c0_29], %39 {strides = array<i32>} : memref<9x32xf32, #tpu.memory_space<vmem>>, vector<9x8xf32>,
    %41 = vector.extract_strided_slice %8 {offsets = [0, 8], sizes = [9, 8], strides = [1, 1]} : vector<9x32xf32> to vector<9x8xf32>
    %42 = vector.extract_strided_slice %13 {offsets = [0, 8], sizes = [9, 8], strides = [1, 1]} : vector<9x32xf32> to vector<9x8xf32>
    %43 = vector.extract_strided_slice %18 {offsets = [0, 8], sizes = [9, 8], strides = [1, 1]} : vector<9x32xf32> to vector<9x8xf32>
    %cst_30 = arith.constant dense<0.000000e+00> : vector<9x9xf32>
    %44 = tpu.matmul %41, %42, %cst_30 {dimension_numbers = #tpu.dot_dimension_numbers<[1], [1], [0], [0], [0, 0, 1, 0], [], []>} : vector<9x8xf32>, vector<9x8xf32>, vector<9x9xf32> -> vector<9x9xf32>
    %cst_31 = arith.constant 0.353553385 : f32
    %45 = vector.broadcast %cst_31 : f32 to vector<9x9xf32>
    %46 = arith.mulf %44, %45 : vector<9x9xf32>
    %47 = arith.addf %46, %3 : vector<9x9xf32>
    %cst_32 = arith.constant dense<0xFF800000> : vector<9xf32>
    %48 = vector.multi_reduction <maximumf>, %47, %cst_32 [1] : vector<9x9xf32> to vector<9xf32>
    %49 = vector.shape_cast %48 : vector<9xf32> to vector<9x1xf32>
    %50 = vector.broadcast %49 : vector<9x1xf32> to vector<9x9xf32>
    %51 = arith.subf %47, %50 : vector<9x9xf32>
    %52 = math.exp %51 : vector<9x9xf32>
    %cst_33 = arith.constant dense<0.000000e+00> : vector<9xf32>
    %53 = vector.multi_reduction <add>, %52, %cst_33 [1] : vector<9x9xf32> to vector<9xf32>
    %54 = vector.shape_cast %53 : vector<9xf32> to vector<9x1xf32>
    %55 = tpu.reciprocal %54 {approx = true} : vector<9x1xf32> -> vector<9x1xf32>
    %56 = vector.broadcast %55 : vector<9x1xf32> to vector<9x9xf32>
    %57 = arith.mulf %52, %56 : vector<9x9xf32>
    %c0_34 = arith.constant 0 : index
    %c1 = arith.constant 1 : index
    %c0_35 = arith.constant 0 : index
    %c0_36 = arith.constant 0 : index
    %58 = vector.load %arg22[%c0_34, %c1, %c0_35, %c0_36] : memref<1x4x9x9xf32, #tpu.memory_space<vmem>>, vector<1x1x9x9xf32>
    %59 = vector.shape_cast %58 : vector<1x1x9x9xf32> to vector<9x9xf32>
    %60 = vector.shape_cast %57 : vector<9x9xf32> to vector<1x1x9x9xf32>
    tpu.vector_store %arg22[%c0_34, %c1, %c0_35, %c0_36], %60 {strides = array<i32>} : memref<1x4x9x9xf32, #tpu.memory_space<vmem>>, vector<1x1x9x9xf32>,
    %cst_37 = arith.constant dense<0.000000e+00> : vector<9x8xf32>
    %61 = tpu.matmul %57, %43, %cst_37 {dimension_numbers = #tpu.dot_dimension_numbers<[1], [0], [0], [1], [0, 0, 1, 1], [], []>} : vector<9x9xf32>, vector<9x8xf32>, vector<9x8xf32> -> vector<9x8xf32>
    %c0_38 = arith.constant 0 : index
    %c8 = arith.constant 8 : index
    %62 = vector.load %arg23[%c0_38, %c8] : memref<9x32xf32, #tpu.memory_space<vmem>>, vector<9x8xf32>
    tpu.vector_store %arg23[%c0_38, %c8], %61 {strides = array<i32>} : memref<9x32xf32, #tpu.memory_space<vmem>>, vector<9x8xf32>,
    %63 = vector.extract_strided_slice %8 {offsets = [0, 16], sizes = [9, 8], strides = [1, 1]} : vector<9x32xf32> to vector<9x8xf32>
    %64 = vector.extract_strided_slice %13 {offsets = [0, 16], sizes = [9, 8], strides = [1, 1]} : vector<9x32xf32> to vector<9x8xf32>
    %65 = vector.extract_strided_slice %18 {offsets = [0, 16], sizes = [9, 8], strides = [1, 1]} : vector<9x32xf32> to vector<9x8xf32>
    %cst_39 = arith.constant dense<0.000000e+00> : vector<9x9xf32>
    %66 = tpu.matmul %63, %64, %cst_39 {dimension_numbers = #tpu.dot_dimension_numbers<[1], [1], [0], [0], [0, 0, 1, 0], [], []>} : vector<9x8xf32>, vector<9x8xf32>, vector<9x9xf32> -> vector<9x9xf32>
    %cst_40 = arith.constant 0.353553385 : f32
    %67 = vector.broadcast %cst_40 : f32 to vector<9x9xf32>
    %68 = arith.mulf %66, %67 : vector<9x9xf32>
    %69 = arith.addf %68, %3 : vector<9x9xf32>
    %cst_41 = arith.constant dense<0xFF800000> : vector<9xf32>
    %70 = vector.multi_reduction <maximumf>, %69, %cst_41 [1] : vector<9x9xf32> to vector<9xf32>
    %71 = vector.shape_cast %70 : vector<9xf32> to vector<9x1xf32>
    %72 = vector.broadcast %71 : vector<9x1xf32> to vector<9x9xf32>
    %73 = arith.subf %69, %72 : vector<9x9xf32>
    %74 = math.exp %73 : vector<9x9xf32>
    %cst_42 = arith.constant dense<0.000000e+00> : vector<9xf32>
    %75 = vector.multi_reduction <add>, %74, %cst_42 [1] : vector<9x9xf32> to vector<9xf32>
    %76 = vector.shape_cast %75 : vector<9xf32> to vector<9x1xf32>
    %77 = tpu.reciprocal %76 {approx = true} : vector<9x1xf32> -> vector<9x1xf32>
    %78 = vector.broadcast %77 : vector<9x1xf32> to vector<9x9xf32>
    %79 = arith.mulf %74, %78 : vector<9x9xf32>
    %c0_43 = arith.constant 0 : index
    %c2 = arith.constant 2 : index
    %c0_44 = arith.constant 0 : index
    %c0_45 = arith.constant 0 : index
    %80 = vector.load %arg22[%c0_43, %c2, %c0_44, %c0_45] : memref<1x4x9x9xf32, #tpu.memory_space<vmem>>, vector<1x1x9x9xf32>
    %81 = vector.shape_cast %80 : vector<1x1x9x9xf32> to vector<9x9xf32>
    %82 = vector.shape_cast %79 : vector<9x9xf32> to vector<1x1x9x9xf32>
    tpu.vector_store %arg22[%c0_43, %c2, %c0_44, %c0_45], %82 {strides = array<i32>} : memref<1x4x9x9xf32, #tpu.memory_space<vmem>>, vector<1x1x9x9xf32>,
    %cst_46 = arith.constant dense<0.000000e+00> : vector<9x8xf32>
    %83 = tpu.matmul %79, %65, %cst_46 {dimension_numbers = #tpu.dot_dimension_numbers<[1], [0], [0], [1], [0, 0, 1, 1], [], []>} : vector<9x9xf32>, vector<9x8xf32>, vector<9x8xf32> -> vector<9x8xf32>
    %c0_47 = arith.constant 0 : index
    %c16 = arith.constant 16 : index
    %84 = vector.load %arg23[%c0_47, %c16] : memref<9x32xf32, #tpu.memory_space<vmem>>, vector<9x8xf32>
    tpu.vector_store %arg23[%c0_47, %c16], %83 {strides = array<i32>} : memref<9x32xf32, #tpu.memory_space<vmem>>, vector<9x8xf32>,
    %85 = vector.extract_strided_slice %8 {offsets = [0, 24], sizes = [9, 8], strides = [1, 1]} : vector<9x32xf32> to vector<9x8xf32>
    %86 = vector.extract_strided_slice %13 {offsets = [0, 24], sizes = [9, 8], strides = [1, 1]} : vector<9x32xf32> to vector<9x8xf32>
    %87 = vector.extract_strided_slice %18 {offsets = [0, 24], sizes = [9, 8], strides = [1, 1]} : vector<9x32xf32> to vector<9x8xf32>
    %cst_48 = arith.constant dense<0.000000e+00> : vector<9x9xf32>
    %88 = tpu.matmul %85, %86, %cst_48 {dimension_numbers = #tpu.dot_dimension_numbers<[1], [1], [0], [0], [0, 0, 1, 0], [], []>} : vector<9x8xf32>, vector<9x8xf32>, vector<9x9xf32> -> vector<9x9xf32>
    %cst_49 = arith.constant 0.353553385 : f32
    %89 = vector.broadcast %cst_49 : f32 to vector<9x9xf32>
    %90 = arith.mulf %88, %89 : vector<9x9xf32>
    %91 = arith.addf %90, %3 : vector<9x9xf32>
    %cst_50 = arith.constant dense<0xFF800000> : vector<9xf32>
    %92 = vector.multi_reduction <maximumf>, %91, %cst_50 [1] : vector<9x9xf32> to vector<9xf32>
    %93 = vector.shape_cast %92 : vector<9xf32> to vector<9x1xf32>
    %94 = vector.broadcast %93 : vector<9x1xf32> to vector<9x9xf32>
    %95 = arith.subf %91, %94 : vector<9x9xf32>
    %96 = math.exp %95 : vector<9x9xf32>
    %cst_51 = arith.constant dense<0.000000e+00> : vector<9xf32>
    %97 = vector.multi_reduction <add>, %96, %cst_51 [1] : vector<9x9xf32> to vector<9xf32>
    %98 = vector.shape_cast %97 : vector<9xf32> to vector<9x1xf32>
    %99 = tpu.reciprocal %98 {approx = true} : vector<9x1xf32> -> vector<9x1xf32>
    %100 = vector.broadcast %99 : vector<9x1xf32> to vector<9x9xf32>
    %101 = arith.mulf %96, %100 : vector<9x9xf32>
    %c0_52 = arith.constant 0 : index
    %c3 = arith.constant 3 : index
    %c0_53 = arith.constant 0 : index
    %c0_54 = arith.constant 0 : index
    %102 = vector.load %arg22[%c0_52, %c3, %c0_53, %c0_54] : memref<1x4x9x9xf32, #tpu.memory_space<vmem>>, vector<1x1x9x9xf32>
    %103 = vector.shape_cast %102 : vector<1x1x9x9xf32> to vector<9x9xf32>
    %104 = vector.shape_cast %101 : vector<9x9xf32> to vector<1x1x9x9xf32>
    tpu.vector_store %arg22[%c0_52, %c3, %c0_53, %c0_54], %104 {strides = array<i32>} : memref<1x4x9x9xf32, #tpu.memory_space<vmem>>, vector<1x1x9x9xf32>,
    %cst_55 = arith.constant dense<0.000000e+00> : vector<9x8xf32>
    %105 = tpu.matmul %101, %87, %cst_55 {dimension_numbers = #tpu.dot_dimension_numbers<[1], [0], [0], [1], [0, 0, 1, 1], [], []>} : vector<9x9xf32>, vector<9x8xf32>, vector<9x8xf32> -> vector<9x8xf32>
    %c0_56 = arith.constant 0 : index
    %c24 = arith.constant 24 : index
    %106 = vector.load %arg23[%c0_56, %c24] : memref<9x32xf32, #tpu.memory_space<vmem>>, vector<9x8xf32>
    tpu.vector_store %arg23[%c0_56, %c24], %105 {strides = array<i32>} : memref<9x32xf32, #tpu.memory_space<vmem>>, vector<9x8xf32>,
    %c0_57 = arith.constant 0 : index
    %c0_58 = arith.constant 0 : index
    %107 = vector.load %arg23[%c0_57, %c0_58] : memref<9x32xf32, #tpu.memory_space<vmem>>, vector<9x32xf32>
    %c0_59 = arith.constant 0 : index
    %c0_60 = arith.constant 0 : index
    %108 = vector.load %arg9[%c0_59, %c0_60] : memref<32x32xf32, #tpu.memory_space<vmem>>, vector<32x32xf32>
    %cst_61 = arith.constant dense<0.000000e+00> : vector<9x32xf32>
    %109 = tpu.matmul %107, %108, %cst_61 {dimension_numbers = #tpu.dot_dimension_numbers<[1], [0], [0], [1], [0, 0, 1, 1], [], []>} : vector<9x32xf32>, vector<32x32xf32>, vector<9x32xf32> -> vector<9x32xf32>
    %c0_62 = arith.constant 0 : index
    %c0_63 = arith.constant 0 : index
    %110 = vector.load %arg10[%c0_62, %c0_63] : memref<1x32xf32, #tpu.memory_space<vmem>>, vector<1x32xf32>
    %111 = vector.broadcast %110 : vector<1x32xf32> to vector<9x32xf32>
    %112 = arith.addf %109, %111 : vector<9x32xf32>
    %113 = arith.negf %112 : vector<9x32xf32>
    %114 = math.exp %113 : vector<9x32xf32>
    %cst_64 = arith.constant 1.000000e+00 : f32
    %115 = vector.broadcast %cst_64 : f32 to vector<9x32xf32>
    %116 = arith.addf %115, %114 : vector<9x32xf32>
    %117 = arith.divf %115, %116 : vector<9x32xf32>
    %118 = arith.mulf %112, %117 : vector<9x32xf32>
    %c0_65 = arith.constant 0 : index
    %c0_66 = arith.constant 0 : index
    %119 = vector.load %arg11[%c0_65, %c0_66] : memref<32x32xf32, #tpu.memory_space<vmem>>, vector<32x32xf32>
    %cst_67 = arith.constant dense<0.000000e+00> : vector<9x32xf32>
    %120 = tpu.matmul %118, %119, %cst_67 {dimension_numbers = #tpu.dot_dimension_numbers<[1], [0], [0], [1], [0, 0, 1, 1], [], []>} : vector<9x32xf32>, vector<32x32xf32>, vector<9x32xf32> -> vector<9x32xf32>
    %c0_68 = arith.constant 0 : index
    %c0_69 = arith.constant 0 : index
    %121 = vector.load %arg12[%c0_68, %c0_69] : memref<1x32xf32, #tpu.memory_space<vmem>>, vector<1x32xf32>
    %122 = vector.broadcast %121 : vector<1x32xf32> to vector<9x32xf32>
    %123 = arith.addf %120, %122 : vector<9x32xf32>
    %124 = arith.addf %123, %1 : vector<9x32xf32>
    %cst_70 = arith.constant dense<0.000000e+00> : vector<9xf32>
    %125 = vector.multi_reduction <add>, %124, %cst_70 [1] : vector<9x32xf32> to vector<9xf32>
    %126 = vector.shape_cast %125 : vector<9xf32> to vector<9x1xf32>
    %cst_71 = arith.constant 3.200000e+01 : f32
    %127 = vector.broadcast %cst_71 : f32 to vector<9x1xf32>
    %128 = arith.divf %126, %127 : vector<9x1xf32>
    %129 = vector.broadcast %128 : vector<9x1xf32> to vector<9x32xf32>
    %130 = arith.subf %124, %129 : vector<9x32xf32>
    %131 = arith.mulf %130, %130 : vector<9x32xf32>
    %cst_72 = arith.constant dense<0.000000e+00> : vector<9xf32>
    %132 = vector.multi_reduction <add>, %131, %cst_72 [1] : vector<9x32xf32> to vector<9xf32>
    %133 = vector.shape_cast %132 : vector<9xf32> to vector<9x1xf32>
    %cst_73 = arith.constant 3.200000e+01 : f32
    %134 = vector.broadcast %cst_73 : f32 to vector<9x1xf32>
    %135 = arith.divf %133, %134 : vector<9x1xf32>
    %136 = vector.broadcast %128 : vector<9x1xf32> to vector<9x32xf32>
    %137 = arith.subf %124, %136 : vector<9x32xf32>
    %cst_74 = arith.constant 9.99999997E-7 : f32
    %138 = vector.broadcast %cst_74 : f32 to vector<9x1xf32>
    %139 = arith.addf %135, %138 : vector<9x1xf32>
    %140 = math.rsqrt %139 : vector<9x1xf32>
    %141 = vector.broadcast %140 : vector<9x1xf32> to vector<9x32xf32>
    %142 = arith.mulf %137, %141 : vector<9x32xf32>
    %c0_75 = arith.constant 0 : index
    %c0_76 = arith.constant 0 : index
    %143 = vector.load %arg13[%c0_75, %c0_76] : memref<1x32xf32, #tpu.memory_space<vmem>>, vector<1x32xf32>
    %144 = vector.broadcast %143 : vector<1x32xf32> to vector<9x32xf32>
    %145 = arith.mulf %142, %144 : vector<9x32xf32>
    %c0_77 = arith.constant 0 : index
    %c0_78 = arith.constant 0 : index
    %146 = vector.load %arg14[%c0_77, %c0_78] : memref<1x32xf32, #tpu.memory_space<vmem>>, vector<1x32xf32>
    %147 = vector.broadcast %146 : vector<1x32xf32> to vector<9x32xf32>
    %148 = arith.addf %145, %147 : vector<9x32xf32>
    %c0_79 = arith.constant 0 : index
    %c0_80 = arith.constant 0 : index
    %149 = vector.load %arg15[%c0_79, %c0_80] : memref<32x64xf32, #tpu.memory_space<vmem>>, vector<32x64xf32>
    %cst_81 = arith.constant dense<0.000000e+00> : vector<9x64xf32>
    %150 = tpu.matmul %148, %149, %cst_81 {dimension_numbers = #tpu.dot_dimension_numbers<[1], [0], [0], [1], [0, 0, 1, 1], [], []>} : vector<9x32xf32>, vector<32x64xf32>, vector<9x64xf32> -> vector<9x64xf32>
    %c0_82 = arith.constant 0 : index
    %c0_83 = arith.constant 0 : index
    %151 = vector.load %arg16[%c0_82, %c0_83] : memref<1x64xf32, #tpu.memory_space<vmem>>, vector<1x64xf32>
    %152 = vector.broadcast %151 : vector<1x64xf32> to vector<9x64xf32>
    %153 = arith.addf %150, %152 : vector<9x64xf32>
    %154 = arith.mulf %153, %153 : vector<9x64xf32>
    %155 = arith.mulf %153, %154 : vector<9x64xf32>
    %cst_84 = arith.constant 4.471500e-02 : f32
    %156 = vector.broadcast %cst_84 : f32 to vector<9x64xf32>
    %157 = arith.mulf %156, %155 : vector<9x64xf32>
    %158 = arith.addf %153, %157 : vector<9x64xf32>
    %cst_85 = arith.constant 0.797884583 : f32
    %159 = vector.broadcast %cst_85 : f32 to vector<9x64xf32>
    %160 = arith.mulf %159, %158 : vector<9x64xf32>
    %161 = math.tanh %160 : vector<9x64xf32>
    %cst_86 = arith.constant 1.000000e+00 : f32
    %162 = vector.broadcast %cst_86 : f32 to vector<9x64xf32>
    %163 = arith.addf %162, %161 : vector<9x64xf32>
    %cst_87 = arith.constant 5.000000e-01 : f32
    %164 = vector.broadcast %cst_87 : f32 to vector<9x64xf32>
    %165 = arith.mulf %164, %163 : vector<9x64xf32>
    %166 = arith.mulf %153, %165 : vector<9x64xf32>
    %c0_88 = arith.constant 0 : index
    %c0_89 = arith.constant 0 : index
    %167 = vector.load %arg17[%c0_88, %c0_89] : memref<64x32xf32, #tpu.memory_space<vmem>>, vector<64x32xf32>
    %cst_90 = arith.constant dense<0.000000e+00> : vector<9x32xf32>
    %168 = tpu.matmul %166, %167, %cst_90 {dimension_numbers = #tpu.dot_dimension_numbers<[1], [0], [0], [1], [0, 0, 1, 1], [], []>} : vector<9x64xf32>, vector<64x32xf32>, vector<9x32xf32> -> vector<9x32xf32>
    %c0_91 = arith.constant 0 : index
    %c0_92 = arith.constant 0 : index
    %169 = vector.load %arg18[%c0_91, %c0_92] : memref<1x32xf32, #tpu.memory_space<vmem>>, vector<1x32xf32>
    %170 = vector.broadcast %169 : vector<1x32xf32> to vector<9x32xf32>
    %171 = arith.addf %168, %170 : vector<9x32xf32>
    %172 = arith.addf %171, %148 : vector<9x32xf32>
    %cst_93 = arith.constant dense<0.000000e+00> : vector<9xf32>
    %173 = vector.multi_reduction <add>, %172, %cst_93 [1] : vector<9x32xf32> to vector<9xf32>
    %174 = vector.shape_cast %173 : vector<9xf32> to vector<9x1xf32>
    %cst_94 = arith.constant 3.200000e+01 : f32
    %175 = vector.broadcast %cst_94 : f32 to vector<9x1xf32>
    %176 = arith.divf %174, %175 : vector<9x1xf32>
    %177 = vector.broadcast %176 : vector<9x1xf32> to vector<9x32xf32>
    %178 = arith.subf %172, %177 : vector<9x32xf32>
    %179 = arith.mulf %178, %178 : vector<9x32xf32>
    %cst_95 = arith.constant dense<0.000000e+00> : vector<9xf32>
    %180 = vector.multi_reduction <add>, %179, %cst_95 [1] : vector<9x32xf32> to vector<9xf32>
    %181 = vector.shape_cast %180 : vector<9xf32> to vector<9x1xf32>
    %cst_96 = arith.constant 3.200000e+01 : f32
    %182 = vector.broadcast %cst_96 : f32 to vector<9x1xf32>
    %183 = arith.divf %181, %182 : vector<9x1xf32>
    %184 = vector.broadcast %176 : vector<9x1xf32> to vector<9x32xf32>
    %185 = arith.subf %172, %184 : vector<9x32xf32>
    %cst_97 = arith.constant 9.99999997E-7 : f32
    %186 = vector.broadcast %cst_97 : f32 to vector<9x1xf32>
    %187 = arith.addf %183, %186 : vector<9x1xf32>
    %188 = math.rsqrt %187 : vector<9x1xf32>
    %189 = vector.broadcast %188 : vector<9x1xf32> to vector<9x32xf32>
    %190 = arith.mulf %185, %189 : vector<9x32xf32>
    %c0_98 = arith.constant 0 : index
    %c0_99 = arith.constant 0 : index
    %191 = vector.load %arg19[%c0_98, %c0_99] : memref<1x32xf32, #tpu.memory_space<vmem>>, vector<1x32xf32>
    %192 = vector.broadcast %191 : vector<1x32xf32> to vector<9x32xf32>
    %193 = arith.mulf %190, %192 : vector<9x32xf32>
    %c0_100 = arith.constant 0 : index
    %c0_101 = arith.constant 0 : index
    %194 = vector.load %arg20[%c0_100, %c0_101] : memref<1x32xf32, #tpu.memory_space<vmem>>, vector<1x32xf32>
    %195 = vector.broadcast %194 : vector<1x32xf32> to vector<9x32xf32>
    %196 = arith.addf %193, %195 : vector<9x32xf32>
    %c0_102 = arith.constant 0 : index
    %c0_103 = arith.constant 0 : index
    %c0_104 = arith.constant 0 : index
    %197 = vector.load %arg21[%c0_102, %c0_103, %c0_104] : memref<1x9x32xf32, #tpu.memory_space<vmem>>, vector<1x9x32xf32>
    %198 = vector.shape_cast %197 : vector<1x9x32xf32> to vector<9x32xf32>
    %199 = vector.shape_cast %196 : vector<9x32xf32> to vector<1x9x32xf32>
    tpu.vector_store %arg21[%c0_102, %c0_103, %c0_104], %199 {strides = array<i32>} : memref<1x9x32xf32, #tpu.memory_space<vmem>>, vector<1x9x32xf32>,
    return
  }
  func.func @transform_0(%arg0: i32) -> (i32, i32, i32) {
    %c0_i32 = arith.constant 0 : i32
    %c0_i32_0 = arith.constant 0 : i32
    %c0_i32_1 = arith.constant 0 : i32
    return %arg0, %c0_i32, %c0_i32_0 : i32, i32, i32
  }
  func.func @transform_1(%arg0: i32) -> (i32, i32, i32) {
    %c0_i32 = arith.constant 0 : i32
    %c0_i32_0 = arith.constant 0 : i32
    %c0_i32_1 = arith.constant 0 : i32
    return %arg0, %c0_i32, %c0_i32_0 : i32, i32, i32
  }
  func.func @transform_2(%arg0: i32) -> (i32, i32) {
    %c0_i32 = arith.constant 0 : i32
    %c0_i32_0 = arith.constant 0 : i32
    %c0_i32_1 = arith.constant 0 : i32
    return %c0_i32, %c0_i32_0 : i32, i32
  }
  func.func @transform_3(%arg0: i32) -> (i32, i32) {
    %c0_i32 = arith.constant 0 : i32
    %c0_i32_0 = arith.constant 0 : i32
    %c0_i32_1 = arith.constant 0 : i32
    return %c0_i32, %c0_i32_0 : i32, i32
  }
  func.func @transform_4(%arg0: i32) -> (i32, i32) {
    %c0_i32 = arith.constant 0 : i32
    %c0_i32_0 = arith.constant 0 : i32
    %c0_i32_1 = arith.constant 0 : i32
    return %c0_i32, %c0_i32_0 : i32, i32
  }
  func.func @transform_5(%arg0: i32) -> (i32, i32) {
    %c0_i32 = arith.constant 0 : i32
    %c0_i32_0 = arith.constant 0 : i32
    %c0_i32_1 = arith.constant 0 : i32
    return %c0_i32, %c0_i32_0 : i32, i32
  }
  func.func @transform_6(%arg0: i32) -> (i32, i32) {
    %c0_i32 = arith.constant 0 : i32
    %c0_i32_0 = arith.constant 0 : i32
    %c0_i32_1 = arith.constant 0 : i32
    return %c0_i32, %c0_i32_0 : i32, i32
  }
  func.func @transform_7(%arg0: i32) -> (i32, i32) {
    %c0_i32 = arith.constant 0 : i32
    %c0_i32_0 = arith.constant 0 : i32
    %c0_i32_1 = arith.constant 0 : i32
    return %c0_i32, %c0_i32_0 : i32, i32
  }
  func.func @transform_8(%arg0: i32) -> (i32, i32) {
    %c0_i32 = arith.constant 0 : i32
    %c0_i32_0 = arith.constant 0 : i32
    %c0_i32_1 = arith.constant 0 : i32
    return %c0_i32, %c0_i32_0 : i32, i32
  }
  func.func @transform_9(%arg0: i32) -> (i32, i32) {
    %c0_i32 = arith.constant 0 : i32
    %c0_i32_0 = arith.constant 0 : i32
    %c0_i32_1 = arith.constant 0 : i32
    return %c0_i32, %c0_i32_0 : i32, i32
  }
  func.func @transform_10(%arg0: i32) -> (i32, i32) {
    %c0_i32 = arith.constant 0 : i32
    %c0_i32_0 = arith.constant 0 : i32
    %c0_i32_1 = arith.constant 0 : i32
    return %c0_i32, %c0_i32_0 : i32, i32
  }
  func.func @transform_11(%arg0: i32) -> (i32, i32) {
    %c0_i32 = arith.constant 0 : i32
    %c0_i32_0 = arith.constant 0 : i32
    %c0_i32_1 = arith.constant 0 : i32
    return %c0_i32, %c0_i32_0 : i32, i32
  }
  func.func @transform_12(%arg0: i32) -> (i32, i32) {
    %c0_i32 = arith.constant 0 : i32
    %c0_i32_0 = arith.constant 0 : i32
    %c0_i32_1 = arith.constant 0 : i32
    return %c0_i32, %c0_i32_0 : i32, i32
  }
  func.func @transform_13(%arg0: i32) -> (i32, i32) {
    %c0_i32 = arith.constant 0 : i32
    %c0_i32_0 = arith.constant 0 : i32
    %c0_i32_1 = arith.constant 0 : i32
    return %c0_i32, %c0_i32_0 : i32, i32
  }
  func.func @transform_14(%arg0: i32) -> (i32, i32) {
    %c0_i32 = arith.constant 0 : i32
    %c0_i32_0 = arith.constant 0 : i32
    %c0_i32_1 = arith.constant 0 : i32
    return %c0_i32, %c0_i32_0 : i32, i32
  }
  func.func @transform_15(%arg0: i32) -> (i32, i32) {
    %c0_i32 = arith.constant 0 : i32
    %c0_i32_0 = arith.constant 0 : i32
    %c0_i32_1 = arith.constant 0 : i32
    return %c0_i32, %c0_i32_0 : i32, i32
  }
  func.func @transform_16(%arg0: i32) -> (i32, i32) {
    %c0_i32 = arith.constant 0 : i32
    %c0_i32_0 = arith.constant 0 : i32
    %c0_i32_1 = arith.constant 0 : i32
    return %c0_i32, %c0_i32_0 : i32, i32
  }
  func.func @transform_17(%arg0: i32) -> (i32, i32) {
    %c0_i32 = arith.constant 0 : i32
    %c0_i32_0 = arith.constant 0 : i32
    %c0_i32_1 = arith.constant 0 : i32
    return %c0_i32, %c0_i32_0 : i32, i32
  }
  func.func @transform_18(%arg0: i32) -> (i32, i32) {
    %c0_i32 = arith.constant 0 : i32
    %c0_i32_0 = arith.constant 0 : i32
    %c0_i32_1 = arith.constant 0 : i32
    return %c0_i32, %c0_i32_0 : i32, i32
  }
  func.func @transform_19(%arg0: i32) -> (i32, i32) {
    %c0_i32 = arith.constant 0 : i32
    %c0_i32_0 = arith.constant 0 : i32
    %c0_i32_1 = arith.constant 0 : i32
    return %c0_i32, %c0_i32_0 : i32, i32
  }
  func.func @transform_20(%arg0: i32) -> (i32, i32, i32) {
    %c0_i32 = arith.constant 0 : i32
    %c0_i32_0 = arith.constant 0 : i32
    %c0_i32_1 = arith.constant 0 : i32
    return %arg0, %c0_i32, %c0_i32_0 : i32, i32, i32
  }
  func.func @transform_21(%arg0: i32) -> (i32, i32, i32, i32) {
    %c0_i32 = arith.constant 0 : i32
    %c0_i32_0 = arith.constant 0 : i32
    %c0_i32_1 = arith.constant 0 : i32
    %c0_i32_2 = arith.constant 0 : i32
    return %arg0, %c0_i32, %c0_i32_0, %c0_i32_1 : i32, i32, i32, i32
  }
}

</mosaic_0001>

<llo_original>
// kernel: neg.1
$region0: #{neg.1}
  #allocation0 [shape = 's32[1]{0}', space=sflag, size = 0x4, scoped, tag = 'scoped memory for neg.1']
  %s0 = inlined_call_operand.vmem [shape: f32[2,9,9], index: 0, kind: input, shape index: {}]
  %s1 = inlined_call_operand.vmem [shape: f32[2,9,9], index: 1, kind: output, shape index: {}]
  %v2 = vld [vmem:[%s0] sm:$0xff]
  %3 = xla_tuple %v2
  %4 = xla_tuple %3
  %v5 = vxor.u32 %v2, 2147483648
  %6 = xla_tuple %v5
  %7 = vst [vmem:[%s1] sm:$0xff] %v5
  %s8 = scalar_lea.vmem %s0, 16
  %v9 = vld [vmem:[%s8] sm:$0xff]
  %10 = xla_tuple %v9
  %11 = xla_tuple %10
  %v12 = vxor.u32 %v9, 2147483648
  %13 = xla_tuple %v12
  %s14 = scalar_lea.vmem %s1, 16
  %15 = vst [vmem:[%s14] sm:$0xff] %v12
  %s16 = scalar_lea.vmem %s0, 8
  %v17 = vld [vmem:[%s16] sm:$0xff]
  %18 = xla_tuple %v17
  %19 = xla_tuple %18
  %v20 = vxor.u32 %v17, 2147483648
  %21 = xla_tuple %v20
  %s22 = scalar_lea.vmem %s1, 8
  %23 = vst [vmem:[%s22] sm:$0xff] %v20
  %s24 = scalar_lea.vmem %s0, 24
  %v25 = vld [vmem:[%s24] sm:$0xff]
  %26 = xla_tuple %v25
  %27 = xla_tuple %26
  %v28 = vxor.u32 %v25, 2147483648
  %29 = xla_tuple %v28
  %s30 = scalar_lea.vmem %s1, 24
  %31 = vst [vmem:[%s30] sm:$0xff] %v28

// kernel: multi_scale_transformer_forward.1
$region0: #{multi_scale_transformer_forward.1}
  #allocation0 [shape = 'u32[]', space=smem, size = 0x4, offset = 0x4, fixed_abs, tag = 'smem constant byte address 0x4 - core index']
  #allocation1 [shape = 'u32[144,128]{1,0:T(1,128)}', space=vmem, size = 0x12000, scoped, tag = 'internal scratch']
  #allocation2 [shape = 'f32[9,32]{1,0:T(8,128)}', space=vmem, size = 0x2000, scoped, tag = 'scratch operand']
  %s0 = inlined_call_operand.vmem [shape: f32[2,9,32], index: 0, kind: input, shape index: {}]
  %s1 = inlined_call_operand.vmem [shape: f32[2,9,9], index: 1, kind: input, shape index: {}]
  %s2 = inlined_call_operand.vmem [shape: f32[32,32], index: 2, kind: input, shape index: {}]
  %s3 = inlined_call_operand.vmem [shape: f32[1,32], index: 3, kind: input, shape index: {}]
  %s4 = inlined_call_operand.vmem [shape: f32[32,32], index: 4, kind: input, shape index: {}]
  %s5 = inlined_call_operand.vmem [shape: f32[1,32], index: 5, kind: input, shape index: {}]
  %s6 = inlined_call_operand.vmem [shape: f32[32,32], index: 6, kind: input, shape index: {}]
  %s7 = inlined_call_operand.vmem [shape: f32[1,32], index: 7, kind: input, shape index: {}]
  %s8 = inlined_call_operand.vmem [shape: f32[32,32], index: 8, kind: input, shape index: {}]
  %s9 = inlined_call_operand.vmem [shape: f32[1,32], index: 9, kind: input, shape index: {}]
  %s10 = inlined_call_operand.vmem [shape: f32[32,32], index: 10, kind: input, shape index: {}]
  %s11 = inlined_call_operand.vmem [shape: f32[1,32], index: 11, kind: input, shape index: {}]
  %s12 = inlined_call_operand.vmem [shape: f32[1,32], index: 12, kind: input, shape index: {}]
  %s13 = inlined_call_operand.vmem [shape: f32[1,32], index: 13, kind: input, shape index: {}]
  %s14 = inlined_call_operand.vmem [shape: f32[32,64], index: 14, kind: input, shape index: {}]
  %s15 = inlined_call_operand.vmem [shape: f32[1,64], index: 15, kind: input, shape index: {}]
  %s16 = inlined_call_operand.vmem [shape: f32[64,32], index: 16, kind: input, shape index: {}]
  %s17 = inlined_call_operand.vmem [shape: f32[1,32], index: 17, kind: input, shape index: {}]
  %s18 = inlined_call_operand.vmem [shape: f32[1,32], index: 18, kind: input, shape index: {}]
  %s19 = inlined_call_operand.vmem [shape: f32[1,32], index: 19, kind: input, shape index: {}]
  %s20 = inlined_call_operand.vmem [shape: f32[2,9,32], index: 20, kind: output, shape index: {0}]
  %s21 = inlined_call_operand.vmem [shape: f32[2,4,9,9], index: 21, kind: output, shape index: {1}]
  %22 = xla_tuple %s20, %s21
  %s23 = sld [smem:[#allocation0]]
  $region121: #{multi_scale_transformer_forward.1} parent=0
    _
  %s25 = ssub.s32 1, %s23
  %s26 = scalar_select 0, %s25, %s23
  loop: start=0, step=1, limit=4
  $region2: #{multi_scale_transformer_forward.1} parent=0 // loop_pre_header
    _
  $region3: #{multi_scale_transformer_forward.1} parent=0 // loop_header
    %s28 = sphi 0, %s32
    %p29 = scmp.ge.s32.totalorder %s28, 4
    %s38 = sphi 0, %s40
    %s41 = sphi 0, %s38
    %s42 = sphi 0, %s41
    %s58 = sphi 0, %s42
    %s64 = sphi 0, %s66
    %s67 = sphi 0, %s64
    %s68 = sphi 0, %s67
    %s84 = sphi 0, %s68
    %s88 = sphi 0, %s88
    %s90 = sphi 0, %s88
    %s91 = sphi 0, %s90
    %s105 = sphi 0, %s91
    %s109 = sphi 0, %s109
    %s111 = sphi 0, %s109
    %s112 = sphi 0, %s111
    %s126 = sphi 0, %s112
    %s130 = sphi 0, %s130
    %s132 = sphi 0, %s130
    %s133 = sphi 0, %s132
    %s147 = sphi 0, %s133
    %s151 = sphi 0, %s151
    %s153 = sphi 0, %s151
    %s154 = sphi 0, %s153
    %s168 = sphi 0, %s154
    %s172 = sphi 0, %s172
    %s174 = sphi 0, %s172
    %s175 = sphi 0, %s174
    %s189 = sphi 0, %s175
    %s193 = sphi 0, %s193
    %s195 = sphi 0, %s193
    %s196 = sphi 0, %s195
    %s210 = sphi 0, %s196
    %s214 = sphi 0, %s214
    %s216 = sphi 0, %s214
    %s217 = sphi 0, %s216
    %s231 = sphi 0, %s217
    %s235 = sphi 0, %s235
    %s237 = sphi 0, %s235
    %s238 = sphi 0, %s237
    %s252 = sphi 0, %s238
    %s256 = sphi 0, %s256
    %s258 = sphi 0, %s256
    %s259 = sphi 0, %s258
    %s273 = sphi 0, %s259
    %s277 = sphi 0, %s277
    %s279 = sphi 0, %s277
    %s280 = sphi 0, %s279
    %s294 = sphi 0, %s280
    %s298 = sphi 0, %s298
    %s300 = sphi 0, %s298
    %s301 = sphi 0, %s300
    %s315 = sphi 0, %s301
    %s319 = sphi 0, %s319
    %s321 = sphi 0, %s319
    %s322 = sphi 0, %s321
    %s336 = sphi 0, %s322
    %s340 = sphi 0, %s340
    %s342 = sphi 0, %s340
    %s343 = sphi 0, %s342
    %s357 = sphi 0, %s343
    %s361 = sphi 0, %s361
    %s363 = sphi 0, %s361
    %s364 = sphi 0, %s363
    %s378 = sphi 0, %s364
    %s382 = sphi 0, %s382
    %s384 = sphi 0, %s382
    %s385 = sphi 0, %s384
    %s399 = sphi 0, %s385
    %s403 = sphi 0, %s403
    %s405 = sphi 0, %s403
    %s406 = sphi 0, %s405
    %s420 = sphi 0, %s406
    %s424 = sphi 0, %s424
    %s426 = sphi 0, %s424
    %s427 = sphi 0, %s426
    %s441 = sphi 0, %s427
    %s445 = sphi 0, %s445
    %s447 = sphi 0, %s445
    %s448 = sphi 0, %s447
    %s462 = sphi 0, %s448
    %s468 = sphi 0, %s470
    %s471 = sphi 0, %s468
    %s472 = sphi 0, %s471
    %s488 = sphi 0, %s472
    %s494 = sphi 0, %s496
    %s497 = sphi 0, %s494
    %s498 = sphi 0, %s497
    %s514 = sphi 0, %s498
  $region4: #{multi_scale_transformer_forward.1} parent=0 // loop_header_branch
    %31 = sbr.rel (%p29) target = $region8
  $region5: #{multi_scale_transformer_forward.1} parent=0 // loop_body
    %s33 = ssub.s32 %s28, 1
    %s34 = ssub.s32 %s28, 2
    %s35 = sadd.s32 %s28, 1
    %s36 = ssub.s32 %s28, %s35
    %p37 = scmp.eq.s32.totalorder %s36, 0
    %s39 = sadd.s32 %s38, 1
    %s40 = scalar_select %p37, %s38, %s39
    %p43 = pneg %p37
    %p44 = scmp.eq.s32.totalorder %s28, 1
    %p45 = por %p43, %p44
    %p46 = scmp.ne.s32.totalorder %s38, %s41
    %p47 = scmp.eq.s32.totalorder %s28, 0
    %p48 = por %p46, %p47
    %p49 = scmp.ne.s32.totalorder %s38, %s41
    %p50 = scmp.eq.s32.totalorder %s33, 1
    %p51 = por %p49, %p50
    %p52 = scmp.ne.s32.totalorder %s41, %s42
    %p53 = scmp.eq.s32.totalorder %s33, 0
    %p54 = por %p52, %p53
    %p55 = scmp.ne.s32.totalorder %s41, %s42
    %p56 = scmp.eq.s32.totalorder %s34, 1
    %p57 = por %p55, %p56
    %p59 = scmp.ne.s32.totalorder %s42, %s58
    %p60 = scmp.eq.s32.totalorder %s34, 0
    %p61 = por %p59, %p60
    %s62 = ssub.s32 %s28, %s35
    %p63 = scmp.eq.s32.totalorder %s62, 0
    %s65 = sadd.s32 %s64, 1
    %s66 = scalar_select %p63, %s64, %s65
    %p69 = pneg %p63
    %p70 = scmp.eq.s32.totalorder %s28, 1
    %p71 = por %p69, %p70
    %p72 = scmp.ne.s32.totalorder %s64, %s67
    %p73 = scmp.eq.s32.totalorder %s28, 0
    %p74 = por %p72, %p73
    %p75 = scmp.ne.s32.totalorder %s64, %s67
    %p76 = scmp.eq.s32.totalorder %s33, 1
    %p77 = por %p75, %p76
    %p78 = scmp.ne.s32.totalorder %s67, %s68
    %p79 = scmp.eq.s32.totalorder %s33, 0
    %p80 = por %p78, %p79
    %p81 = scmp.ne.s32.totalorder %s67, %s68
    %p82 = scmp.eq.s32.totalorder %s34, 1
    %p83 = por %p81, %p82
    %p85 = scmp.ne.s32.totalorder %s68, %s84
    %p86 = scmp.eq.s32.totalorder %s34, 0
    %p87 = por %p85, %p86
    %s89 = sadd.s32 %s88, 1
    %p92 = scmp.eq.s32.totalorder %s28, 1
    %p93 = scmp.ne.s32.totalorder %s88, %s90
    %p94 = scmp.eq.s32.totalorder %s28, 0
    %p95 = por %p93, %p94
    %p96 = scmp.ne.s32.totalorder %s88, %s90
    %p97 = scmp.eq.s32.totalorder %s33, 1
    %p98 = por %p96, %p97
    %p99 = scmp.ne.s32.totalorder %s90, %s91
    %p100 = scmp.eq.s32.totalorder %s33, 0
    %p101 = por %p99, %p100
    %p102 = scmp.ne.s32.totalorder %s90, %s91
    %p103 = scmp.eq.s32.totalorder %s34, 1
    %p104 = por %p102, %p103
    %p106 = scmp.ne.s32.totalorder %s91, %s105
    %p107 = scmp.eq.s32.totalorder %s34, 0
    %p108 = por %p106, %p107
    %s110 = sadd.s32 %s109, 1
    %p113 = scmp.eq.s32.totalorder %s28, 1
    %p114 = scmp.ne.s32.totalorder %s109, %s111
    %p115 = scmp.eq.s32.totalorder %s28, 0
    %p116 = por %p114, %p115
    %p117 = scmp.ne.s32.totalorder %s109, %s111
    %p118 = scmp.eq.s32.totalorder %s33, 1
    %p119 = por %p117, %p118
    %p120 = scmp.ne.s32.totalorder %s111, %s112
    %p121 = scmp.eq.s32.totalorder %s33, 0
    %p122 = por %p120, %p121
    %p123 = scmp.ne.s32.totalorder %s111, %s112
    %p124 = scmp.eq.s32.totalorder %s34, 1
    %p125 = por %p123, %p124
    %p127 = scmp.ne.s32.totalorder %s112, %s126
    %p128 = scmp.eq.s32.totalorder %s34, 0
    %p129 = por %p127, %p128
    %s131 = sadd.s32 %s130, 1
    %p134 = scmp.eq.s32.totalorder %s28, 1
    %p135 = scmp.ne.s32.totalorder %s130, %s132
    %p136 = scmp.eq.s32.totalorder %s28, 0
    %p137 = por %p135, %p136
    %p138 = scmp.ne.s32.totalorder %s130, %s132
    %p139 = scmp.eq.s32.totalorder %s33, 1
    %p140 = por %p138, %p139
    %p141 = scmp.ne.s32.totalorder %s132, %s133
    %p142 = scmp.eq.s32.totalorder %s33, 0
    %p143 = por %p141, %p142
    %p144 = scmp.ne.s32.totalorder %s132, %s133
    %p145 = scmp.eq.s32.totalorder %s34, 1
    %p146 = por %p144, %p145
    %p148 = scmp.ne.s32.totalorder %s133, %s147
    %p149 = scmp.eq.s32.totalorder %s34, 0
    %p150 = por %p148, %p149
    %s152 = sadd.s32 %s151, 1
    %p155 = scmp.eq.s32.totalorder %s28, 1
    %p156 = scmp.ne.s32.totalorder %s151, %s153
    %p157 = scmp.eq.s32.totalorder %s28, 0
    %p158 = por %p156, %p157
    %p159 = scmp.ne.s32.totalorder %s151, %s153
    %p160 = scmp.eq.s32.totalorder %s33, 1
    %p161 = por %p159, %p160
    %p162 = scmp.ne.s32.totalorder %s153, %s154
    %p163 = scmp.eq.s32.totalorder %s33, 0
    %p164 = por %p162, %p163
    %p165 = scmp.ne.s32.totalorder %s153, %s154
    %p166 = scmp.eq.s32.totalorder %s34, 1
    %p167 = por %p165, %p166
    %p169 = scmp.ne.s32.totalorder %s154, %s168
    %p170 = scmp.eq.s32.totalorder %s34, 0
    %p171 = por %p169, %p170
    %s173 = sadd.s32 %s172, 1
    %p176 = scmp.eq.s32.totalorder %s28, 1
    %p177 = scmp.ne.s32.totalorder %s172, %s174
    %p178 = scmp.eq.s32.totalorder %s28, 0
    %p179 = por %p177, %p178
    %p180 = scmp.ne.s32.totalorder %s172, %s174
    %p181 = scmp.eq.s32.totalorder %s33, 1
    %p182 = por %p180, %p181
    %p183 = scmp.ne.s32.totalorder %s174, %s175
    %p184 = scmp.eq.s32.totalorder %s33, 0
    %p185 = por %p183, %p184
    %p186 = scmp.ne.s32.totalorder %s174, %s175
    %p187 = scmp.eq.s32.totalorder %s34, 1
    %p188 = por %p186, %p187
    %p190 = scmp.ne.s32.totalorder %s175, %s189
    %p191 = scmp.eq.s32.totalorder %s34, 0
    %p192 = por %p190, %p191
    %s194 = sadd.s32 %s193, 1
    %p197 = scmp.eq.s32.totalorder %s28, 1
    %p198 = scmp.ne.s32.totalorder %s193, %s195
    %p199 = scmp.eq.s32.totalorder %s28, 0
    %p200 = por %p198, %p199
    %p201 = scmp.ne.s32.totalorder %s193, %s195
    %p202 = scmp.eq.s32.totalorder %s33, 1
    %p203 = por %p201, %p202
    %p204 = scmp.ne.s32.totalorder %s195, %s196
    %p205 = scmp.eq.s32.totalorder %s33, 0
    %p206 = por %p204, %p205
    %p207 = scmp.ne.s32.totalorder %s195, %s196
    %p208 = scmp.eq.s32.totalorder %s34, 1
    %p209 = por %p207, %p208
    %p211 = scmp.ne.s32.totalorder %s196, %s210
    %p212 = scmp.eq.s32.totalorder %s34, 0
    %p213 = por %p211, %p212
    %s215 = sadd.s32 %s214, 1
    %p218 = scmp.eq.s32.totalorder %s28, 1
    %p219 = scmp.ne.s32.totalorder %s214, %s216
    %p220 = scmp.eq.s32.totalorder %s28, 0
    %p221 = por %p219, %p220
    %p222 = scmp.ne.s32.totalorder %s214, %s216
    %p223 = scmp.eq.s32.totalorder %s33, 1
    %p224 = por %p222, %p223
    %p225 = scmp.ne.s32.totalorder %s216, %s217
    %p226 = scmp.eq.s32.totalorder %s33, 0
    %p227 = por %p225, %p226
    %p228 = scmp.ne.s32.totalorder %s216, %s217
    %p229 = scmp.eq.s32.totalorder %s34, 1
    %p230 = por %p228, %p229
    %p232 = scmp.ne.s32.totalorder %s217, %s231
    %p233 = scmp.eq.s32.totalorder %s34, 0
    %p234 = por %p232, %p233
    %s236 = sadd.s32 %s235, 1
    %p239 = scmp.eq.s32.totalorder %s28, 1
    %p240 = scmp.ne.s32.totalorder %s235, %s237
    %p241 = scmp.eq.s32.totalorder %s28, 0
    %p242 = por %p240, %p241
    %p243 = scmp.ne.s32.totalorder %s235, %s237
    %p244 = scmp.eq.s32.totalorder %s33, 1
    %p245 = por %p243, %p244
    %p246 = scmp.ne.s32.totalorder %s237, %s238
    %p247 = scmp.eq.s32.totalorder %s33, 0
    %p248 = por %p246, %p247
    %p249 = scmp.ne.s32.totalorder %s237, %s238
    %p250 = scmp.eq.s32.totalorder %s34, 1
    %p251 = por %p249, %p250
    %p253 = scmp.ne.s32.totalorder %s238, %s252
    %p254 = scmp.eq.s32.totalorder %s34, 0
    %p255 = por %p253, %p254
    %s257 = sadd.s32 %s256, 1
    %p260 = scmp.eq.s32.totalorder %s28, 1
    %p261 = scmp.ne.s32.totalorder %s256, %s258
    %p262 = scmp.eq.s32.totalorder %s28, 0
    %p263 = por %p261, %p262
    %p264 = scmp.ne.s32.totalorder %s256, %s258
    %p265 = scmp.eq.s32.totalorder %s33, 1
    %p266 = por %p264, %p265
    %p267 = scmp.ne.s32.totalorder %s258, %s259
    %p268 = scmp.eq.s32.totalorder %s33, 0
    %p269 = por %p267, %p268
    %p270 = scmp.ne.s32.totalorder %s258, %s259
    %p271 = scmp.eq.s32.totalorder %s34, 1
    %p272 = por %p270, %p271
    %p274 = scmp.ne.s32.totalorder %s259, %s273
    %p275 = scmp.eq.s32.totalorder %s34, 0
    %p276 = por %p274, %p275
    %s278 = sadd.s32 %s277, 1
    %p281 = scmp.eq.s32.totalorder %s28, 1
    %p282 = scmp.ne.s32.totalorder %s277, %s279
    %p283 = scmp.eq.s32.totalorder %s28, 0
    %p284 = por %p282, %p283
    %p285 = scmp.ne.s32.totalorder %s277, %s279
    %p286 = scmp.eq.s32.totalorder %s33, 1
    %p287 = por %p285, %p286
    %p288 = scmp.ne.s32.totalorder %s279, %s280
    %p289 = scmp.eq.s32.totalorder %s33, 0
    %p290 = por %p288, %p289
    %p291 = scmp.ne.s32.totalorder %s279, %s280
    %p292 = scmp.eq.s32.totalorder %s34, 1
    %p293 = por %p291, %p292
    %p295 = scmp.ne.s32.totalorder %s280, %s294
    %p296 = scmp.eq.s32.totalorder %s34, 0
    %p297 = por %p295, %p296
    %s299 = sadd.s32 %s298, 1
    %p302 = scmp.eq.s32.totalorder %s28, 1
    %p303 = scmp.ne.s32.totalorder %s298, %s300
    %p304 = scmp.eq.s32.totalorder %s28, 0
    %p305 = por %p303, %p304
    %p306 = scmp.ne.s32.totalorder %s298, %s300
    %p307 = scmp.eq.s32.totalorder %s33, 1
    %p308 = por %p306, %p307
    %p309 = scmp.ne.s32.totalorder %s300, %s301
    %p310 = scmp.eq.s32.totalorder %s33, 0
    %p311 = por %p309, %p310
    %p312 = scmp.ne.s32.totalorder %s300, %s301
    %p313 = scmp.eq.s32.totalorder %s34, 1
    %p314 = por %p312, %p313
    %p316 = scmp.ne.s32.totalorder %s301, %s315
    %p317 = scmp.eq.s32.totalorder %s34, 0
    %p318 = por %p316, %p317
    %s320 = sadd.s32 %s319, 1
    %p323 = scmp.eq.s32.totalorder %s28, 1
    %p324 = scmp.ne.s32.totalorder %s319, %s321
    %p325 = scmp.eq.s32.totalorder %s28, 0
    %p326 = por %p324, %p325
    %p327 = scmp.ne.s32.totalorder %s319, %s321
    %p328 = scmp.eq.s32.totalorder %s33, 1
    %p329 = por %p327, %p328
    %p330 = scmp.ne.s32.totalorder %s321, %s322
    %p331 = scmp.eq.s32.totalorder %s33, 0
    %p332 = por %p330, %p331
    %p333 = scmp.ne.s32.totalorder %s321, %s322
    %p334 = scmp.eq.s32.totalorder %s34, 1
    %p335 = por %p333, %p334
    %p337 = scmp.ne.s32.totalorder %s322, %s336
    %p338 = scmp.eq.s32.totalorder %s34, 0
    %p339 = por %p337, %p338
    %s341 = sadd.s32 %s340, 1
    %p344 = scmp.eq.s32.totalorder %s28, 1
    %p345 = scmp.ne.s32.totalorder %s340, %s342
    %p346 = scmp.eq.s32.totalorder %s28, 0
    %p347 = por %p345, %p346
    %p348 = scmp.ne.s32.totalorder %s340, %s342
    %p349 = scmp.eq.s32.totalorder %s33, 1
    %p350 = por %p348, %p349
    %p351 = scmp.ne.s32.totalorder %s342, %s343
    %p352 = scmp.eq.s32.totalorder %s33, 0
    %p353 = por %p351, %p352
    %p354 = scmp.ne.s32.totalorder %s342, %s343
    %p355 = scmp.eq.s32.totalorder %s34, 1
    %p356 = por %p354, %p355
    %p358 = scmp.ne.s32.totalorder %s343, %s357
    %p359 = scmp.eq.s32.totalorder %s34, 0
    %p360 = por %p358, %p359
    %s362 = sadd.s32 %s361, 1
    %p365 = scmp.eq.s32.totalorder %s28, 1
    %p366 = scmp.ne.s32.totalorder %s361, %s363
    %p367 = scmp.eq.s32.totalorder %s28, 0
    %p368 = por %p366, %p367
    %p369 = scmp.ne.s32.totalorder %s361, %s363
    %p370 = scmp.eq.s32.totalorder %s33, 1
    %p371 = por %p369, %p370
    %p372 = scmp.ne.s32.totalorder %s363, %s364
    %p373 = scmp.eq.s32.totalorder %s33, 0
    %p374 = por %p372, %p373
    %p375 = scmp.ne.s32.totalorder %s363, %s364
    %p376 = scmp.eq.s32.totalorder %s34, 1
    %p377 = por %p375, %p376
    %p379 = scmp.ne.s32.totalorder %s364, %s378
    %p380 = scmp.eq.s32.totalorder %s34, 0
    %p381 = por %p379, %p380
    %s383 = sadd.s32 %s382, 1
    %p386 = scmp.eq.s32.totalorder %s28, 1
    %p387 = scmp.ne.s32.totalorder %s382, %s384
    %p388 = scmp.eq.s32.totalorder %s28, 0
    %p389 = por %p387, %p388
    %p390 = scmp.ne.s32.totalorder %s382, %s384
    %p391 = scmp.eq.s32.totalorder %s33, 1
    %p392 = por %p390, %p391
    %p393 = scmp.ne.s32.totalorder %s384, %s385
    %p394 = scmp.eq.s32.totalorder %s33, 0
    %p395 = por %p393, %p394
    %p396 = scmp.ne.s32.totalorder %s384, %s385
    %p397 = scmp.eq.s32.totalorder %s34, 1
    %p398 = por %p396, %p397
    %p400 = scmp.ne.s32.totalorder %s385, %s399
    %p401 = scmp.eq.s32.totalorder %s34, 0
    %p402 = por %p400, %p401
    %s404 = sadd.s32 %s403, 1
    %p407 = scmp.eq.s32.totalorder %s28, 1
    %p408 = scmp.ne.s32.totalorder %s403, %s405
    %p409 = scmp.eq.s32.totalorder %s28, 0
    %p410 = por %p408, %p409
    %p411 = scmp.ne.s32.totalorder %s403, %s405
    %p412 = scmp.eq.s32.totalorder %s33, 1
    %p413 = por %p411, %p412
    %p414 = scmp.ne.s32.totalorder %s405, %s406
    %p415 = scmp.eq.s32.totalorder %s33, 0
    %p416 = por %p414, %p415
    %p417 = scmp.ne.s32.totalorder %s405, %s406
    %p418 = scmp.eq.s32.totalorder %s34, 1
    %p419 = por %p417, %p418
    %p421 = scmp.ne.s32.totalorder %s406, %s420
    %p422 = scmp.eq.s32.totalorder %s34, 0
    %p423 = por %p421, %p422
    %s425 = sadd.s32 %s424, 1
    %p428 = scmp.eq.s32.totalorder %s28, 1
    %p429 = scmp.ne.s32.totalorder %s424, %s426
    %p430 = scmp.eq.s32.totalorder %s28, 0
    %p431 = por %p429, %p430
    %p432 = scmp.ne.s32.totalorder %s424, %s426
    %p433 = scmp.eq.s32.totalorder %s33, 1
    %p434 = por %p432, %p433
    %p435 = scmp.ne.s32.totalorder %s426, %s427
    %p436 = scmp.eq.s32.totalorder %s33, 0
    %p437 = por %p435, %p436
    %p438 = scmp.ne.s32.totalorder %s426, %s427
    %p439 = scmp.eq.s32.totalorder %s34, 1
    %p440 = por %p438, %p439
    %p442 = scmp.ne.s32.totalorder %s427, %s441
    %p443 = scmp.eq.s32.totalorder %s34, 0
    %p444 = por %p442, %p443
    %s446 = sadd.s32 %s445, 1
    %p449 = scmp.eq.s32.totalorder %s28, 1
    %p450 = scmp.ne.s32.totalorder %s445, %s447
    %p451 = scmp.eq.s32.totalorder %s28, 0
    %p452 = por %p450, %p451
    %p453 = scmp.ne.s32.totalorder %s445, %s447
    %p454 = scmp.eq.s32.totalorder %s33, 1
    %p455 = por %p453, %p454
    %p456 = scmp.ne.s32.totalorder %s447, %s448
    %p457 = scmp.eq.s32.totalorder %s33, 0
    %p458 = por %p456, %p457
    %p459 = scmp.ne.s32.totalorder %s447, %s448
    %p460 = scmp.eq.s32.totalorder %s34, 1
    %p461 = por %p459, %p460
    %p463 = scmp.ne.s32.totalorder %s448, %s462
    %p464 = scmp.eq.s32.totalorder %s34, 0
    %p465 = por %p463, %p464
    %s466 = ssub.s32 %s28, %s35
    %p467 = scmp.eq.s32.totalorder %s466, 0
    %s469 = sadd.s32 %s468, 1
    %s470 = scalar_select %p467, %s468, %s469
    %p473 = pneg %p467
    %p474 = scmp.eq.s32.totalorder %s28, 1
    %p475 = por %p473, %p474
    %p476 = scmp.ne.s32.totalorder %s468, %s471
    %p477 = scmp.eq.s32.totalorder %s28, 0
    %p478 = por %p476, %p477
    %p479 = scmp.ne.s32.totalorder %s468, %s471
    %p480 = scmp.eq.s32.totalorder %s33, 1
    %p481 = por %p479, %p480
    %p482 = scmp.ne.s32.totalorder %s471, %s472
    %p483 = scmp.eq.s32.totalorder %s33, 0
    %p484 = por %p482, %p483
    %p485 = scmp.ne.s32.totalorder %s471, %s472
    %p486 = scmp.eq.s32.totalorder %s34, 1
    %p487 = por %p485, %p486
    %p489 = scmp.ne.s32.totalorder %s472, %s488
    %p490 = scmp.eq.s32.totalorder %s34, 0
    %p491 = por %p489, %p490
    %s492 = ssub.s32 %s28, %s35
    %p493 = scmp.eq.s32.totalorder %s492, 0
    %s495 = sadd.s32 %s494, 1
    %s496 = scalar_select %p493, %s494, %s495
    %p499 = pneg %p493
    %p500 = scmp.eq.s32.totalorder %s28, 1
    %p501 = por %p499, %p500
    %p502 = scmp.ne.s32.totalorder %s494, %s497
    %p503 = scmp.eq.s32.totalorder %s28, 0
    %p504 = por %p502, %p503
    %p505 = scmp.ne.s32.totalorder %s494, %s497
    %p506 = scmp.eq.s32.totalorder %s33, 1
    %p507 = por %p505, %p506
    %p508 = scmp.ne.s32.totalorder %s497, %s498
    %p509 = scmp.eq.s32.totalorder %s33, 0
    %p510 = por %p508, %p509
    %p511 = scmp.ne.s32.totalorder %s497, %s498
    %p512 = scmp.eq.s32.totalorder %s34, 1
    %p513 = por %p511, %p512
    %p515 = scmp.ne.s32.totalorder %s498, %s514
    %p516 = scmp.eq.s32.totalorder %s34, 0
    %p517 = por %p515, %p516
    %p518 = scmp.le.s32.totalorder 1, %s28
    %p519 = scmp.lt.s32.totalorder %s28, 3
    %p520 = pnand %p518, %p519
    %p521 = pneg %p520
    // Predicated region
    $region9: #{multi_scale_transformer_forward.1} parent=5 // pred_check
      _
    $region10: #{multi_scale_transformer_forward.1} parent=5 // pred_check_branch
      %523 = sbr.rel (%p520) target = $region12
    $region11: #{multi_scale_transformer_forward.1} parent=5 // pred_region
      %s524 = ssub.s32 %s28, 1
      // Predicated region
      $region13: #{multi_scale_transformer_forward.1} parent=11 // pred_check
        %p525 = pneg %p101
      $region14: #{multi_scale_transformer_forward.1} parent=11 // pred_check_branch
        %527 = sbr.rel (%p525) target = $region16
      $region15: #{multi_scale_transformer_forward.1} parent=11 // pred_region
        _
      $region16: #{multi_scale_transformer_forward.1} parent=11 // pred_fallthru
        _
      // Predicated region
      $region17: #{multi_scale_transformer_forward.1} parent=11 // pred_check
        %p528 = pneg %p122
      $region18: #{multi_scale_transformer_forward.1} parent=11 // pred_check_branch
        %530 = sbr.rel (%p528) target = $region20
      $region19: #{multi_scale_transformer_forward.1} parent=11 // pred_region
        _
      $region20: #{multi_scale_transformer_forward.1} parent=11 // pred_fallthru
        _
      // Predicated region
      $region21: #{multi_scale_transformer_forward.1} parent=11 // pred_check
        %p531 = pneg %p143
      $region22: #{multi_scale_transformer_forward.1} parent=11 // pred_check_branch
        %533 = sbr.rel (%p531) target = $region24
      $region23: #{multi_scale_transformer_forward.1} parent=11 // pred_region
        _
      $region24: #{multi_scale_transformer_forward.1} parent=11 // pred_fallthru
        _
      // Predicated region
      $region25: #{multi_scale_transformer_forward.1} parent=11 // pred_check
        %p534 = pneg %p164
      $region26: #{multi_scale_transformer_forward.1} parent=11 // pred_check_branch
        %536 = sbr.rel (%p534) target = $region28
      $region27: #{multi_scale_transformer_forward.1} parent=11 // pred_region
        _
      $region28: #{multi_scale_transformer_forward.1} parent=11 // pred_fallthru
        _
      // Predicated region
      $region29: #{multi_scale_transformer_forward.1} parent=11 // pred_check
        %p537 = pneg %p185
      $region30: #{multi_scale_transformer_forward.1} parent=11 // pred_check_branch
        %539 = sbr.rel (%p537) target = $region32
      $region31: #{multi_scale_transformer_forward.1} parent=11 // pred_region
        _
      $region32: #{multi_scale_transformer_forward.1} parent=11 // pred_fallthru
        _
      // Predicated region
      $region33: #{multi_scale_transformer_forward.1} parent=11 // pred_check
        %p540 = pneg %p206
      $region34: #{multi_scale_transformer_forward.1} parent=11 // pred_check_branch
        %542 = sbr.rel (%p540) target = $region36
      $region35: #{multi_scale_transformer_forward.1} parent=11 // pred_region
        _
      $region36: #{multi_scale_transformer_forward.1} parent=11 // pred_fallthru
        _
      // Predicated region
      $region37: #{multi_scale_transformer_forward.1} parent=11 // pred_check
        %p543 = pneg %p227
      $region38: #{multi_scale_transformer_forward.1} parent=11 // pred_check_branch
        %545 = sbr.rel (%p543) target = $region40
      $region39: #{multi_scale_transformer_forward.1} parent=11 // pred_region
        _
      $region40: #{multi_scale_transformer_forward.1} parent=11 // pred_fallthru
        _
      // Predicated region
      $region41: #{multi_scale_transformer_forward.1} parent=11 // pred_check
        %p546 = pneg %p248
      $region42: #{multi_scale_transformer_forward.1} parent=11 // pred_check_branch
        %548 = sbr.rel (%p546) target = $region44
      $region43: #{multi_scale_transformer_forward.1} parent=11 // pred_region
        _
      $region44: #{multi_scale_transformer_forward.1} parent=11 // pred_fallthru
        _
      // Predicated region
      $region45: #{multi_scale_transformer_forward.1} parent=11 // pred_check
        %p549 = pneg %p269
      $region46: #{multi_scale_transformer_forward.1} parent=11 // pred_check_branch
        %551 = sbr.rel (%p549) target = $region48
      $region47: #{multi_scale_transformer_forward.1} parent=11 // pred_region
        _
      $region48: #{multi_scale_transformer_forward.1} parent=11 // pred_fallthru
        _
      // Predicated region
      $region49: #{multi_scale_transformer_forward.1} parent=11 // pred_check
        %p552 = pneg %p290
      $region50: #{multi_scale_transformer_forward.1} parent=11 // pred_check_branch
        %554 = sbr.rel (%p552) target = $region52
      $region51: #{multi_scale_transformer_forward.1} parent=11 // pred_region
        _
      $region52: #{multi_scale_transformer_forward.1} parent=11 // pred_fallthru
        _
      // Predicated region
      $region53: #{multi_scale_transformer_forward.1} parent=11 // pred_check
        %p555 = pneg %p311
      $region54: #{multi_scale_transformer_forward.1} parent=11 // pred_check_branch
        %557 = sbr.rel (%p555) target = $region56
      $region55: #{multi_scale_transformer_forward.1} parent=11 // pred_region
        _
      $region56: #{multi_scale_transformer_forward.1} parent=11 // pred_fallthru
        _
      // Predicated region
      $region57: #{multi_scale_transformer_forward.1} parent=11 // pred_check
        %p558 = pneg %p332
      $region58: #{multi_scale_transformer_forward.1} parent=11 // pred_check_branch
        %560 = sbr.rel (%p558) target = $region60
      $region59: #{multi_scale_transformer_forward.1} parent=11 // pred_region
        _
      $region60: #{multi_scale_transformer_forward.1} parent=11 // pred_fallthru
        _
      // Predicated region
      $region61: #{multi_scale_transformer_forward.1} parent=11 // pred_check
        %p561 = pneg %p353
      $region62: #{multi_scale_transformer_forward.1} parent=11 // pred_check_branch
        %563 = sbr.rel (%p561) target = $region64
      $region63: #{multi_scale_transformer_forward.1} parent=11 // pred_region
        _
      $region64: #{multi_scale_transformer_forward.1} parent=11 // pred_fallthru
        _
      // Predicated region
      $region65: #{multi_scale_transformer_forward.1} parent=11 // pred_check
        %p564 = pneg %p374
      $region66: #{multi_scale_transformer_forward.1} parent=11 // pred_check_branch
        %566 = sbr.rel (%p564) target = $region68
      $region67: #{multi_scale_transformer_forward.1} parent=11 // pred_region
        _
      $region68: #{multi_scale_transformer_forward.1} parent=11 // pred_fallthru
        _
      // Predicated region
      $region69: #{multi_scale_transformer_forward.1} parent=11 // pred_check
        %p567 = pneg %p395
      $region70: #{multi_scale_transformer_forward.1} parent=11 // pred_check_branch
        %569 = sbr.rel (%p567) target = $region72
      $region71: #{multi_scale_transformer_forward.1} parent=11 // pred_region
        _
      $region72: #{multi_scale_transformer_forward.1} parent=11 // pred_fallthru
        _
      // Predicated region
      $region73: #{multi_scale_transformer_forward.1} parent=11 // pred_check
        %p570 = pneg %p416
      $region74: #{multi_scale_transformer_forward.1} parent=11 // pred_check_branch
        %572 = sbr.rel (%p570) target = $region76
      $region75: #{multi_scale_transformer_forward.1} parent=11 // pred_region
        _
      $region76: #{multi_scale_transformer_forward.1} parent=11 // pred_fallthru
        _
      // Predicated region
      $region77: #{multi_scale_transformer_forward.1} parent=11 // pred_check
        %p573 = pneg %p437
      $region78: #{multi_scale_transformer_forward.1} parent=11 // pred_check_branch
        %575 = sbr.rel (%p573) target = $region80
      $region79: #{multi_scale_transformer_forward.1} parent=11 // pred_region
        _
      $region80: #{multi_scale_transformer_forward.1} parent=11 // pred_fallthru
        _
      // Predicated region
      $region81: #{multi_scale_transformer_forward.1} parent=11 // pred_check
        %p576 = pneg %p458
      $region82: #{multi_scale_transformer_forward.1} parent=11 // pred_check_branch
        %578 = sbr.rel (%p576) target = $region84
      $region83: #{multi_scale_transformer_forward.1} parent=11 // pred_region
        _
      $region84: #{multi_scale_transformer_forward.1} parent=11 // pred_fallthru
        _
    $region12: #{multi_scale_transformer_forward.1} parent=5 // pred_fallthru
      _
    %p579 = scmp.lt.s32.totalorder %s28, 2
    // Predicated region
    $region85: #{multi_scale_transformer_forward.1} parent=5 // pred_check
      %p580 = pneg %p579
    $region86: #{multi_scale_transformer_forward.1} parent=5 // pred_check_branch
      %582 = sbr.rel (%p580) target = $region88
    $region87: #{multi_scale_transformer_forward.1} parent=5 // pred_region
      // Predicated region
      $region89: #{multi_scale_transformer_forward.1} parent=87 // pred_check
        %p583 = pneg %p48
      $region90: #{multi_scale_transformer_forward.1} parent=87 // pred_check_branch
        %585 = sbr.rel (%p583) target = $region92
      $region91: #{multi_scale_transformer_forward.1} parent=87 // pred_region
        %p586 = scmp.lt.s32.totalorder %s28, 1
        %s587 = scalar_select %p586, %s28, 1
        %s588 = smul.addr %s587, 2
        %s589 = smul.addr %s588, 8
        %s590 = scalar_lea.vmem %s0, %s589
      $region92: #{multi_scale_transformer_forward.1} parent=87 // pred_fallthru
        _
      // Predicated region
      $region93: #{multi_scale_transformer_forward.1} parent=87 // pred_check
        %p591 = pneg %p74
      $region94: #{multi_scale_transformer_forward.1} parent=87 // pred_check_branch
        %593 = sbr.rel (%p591) target = $region96
      $region95: #{multi_scale_transformer_forward.1} parent=87 // pred_region
        %p594 = scmp.lt.s32.totalorder %s28, 1
        %s595 = scalar_select %p594, %s28, 1
        %s596 = smul.addr %s595, 2
        %s597 = smul.addr %s596, 8
        %s598 = scalar_lea.vmem %s1, %s597
      $region96: #{multi_scale_transformer_forward.1} parent=87 // pred_fallthru
        _
    $region88: #{multi_scale_transformer_forward.1} parent=5 // pred_fallthru
      _
    %p599 = scmp.le.s32.totalorder 1, %s28
    %p600 = scmp.lt.s32.totalorder %s28, 3
    %p601 = pnand %p599, %p600
    %p602 = pneg %p601
    // Predicated region
    $region97: #{multi_scale_transformer_forward.1} parent=5 // pred_check
      _
    $region98: #{multi_scale_transformer_forward.1} parent=5 // pred_check_branch
      %604 = sbr.rel (%p601) target = $region100
    $region99: #{multi_scale_transformer_forward.1} parent=5 // pred_region
      %s605 = ssub.s32 %s28, 1
      %p606 = scmp.lt.s32.totalorder %s33, 1
      %s607 = scalar_select %p606, %s33, 1
      %s608 = smul.addr %s607, 2
      %s609 = smul.addr %s608, 8
      %s610 = scalar_lea.vmem %s0, %s609
      %p611 = pneg %p54
      %p612 = pneg %p51
      %p613 = scmp.lt.s32.totalorder %s33, 1
      %s614 = scalar_select %p613, %s33, 1
      %s615 = smul.addr %s614, 2
      %s616 = smul.addr %s615, 8
      %s617 = scalar_lea.vmem %s1, %s616
      %p618 = pneg %p80
      %p619 = pneg %p77
      %p620 = pneg %p101
      %p621 = pneg %p98
      %p622 = pneg %p122
      %p623 = pneg %p119
      %p624 = pneg %p143
      %p625 = pneg %p140
      %p626 = pneg %p164
      %p627 = pneg %p161
      %p628 = pneg %p185
      %p629 = pneg %p182
      %p630 = pneg %p206
      %p631 = pneg %p203
      %p632 = pneg %p227
      %p633 = pneg %p224
      %p634 = pneg %p248
      %p635 = pneg %p245
      %p636 = pneg %p269
      %p637 = pneg %p266
      %p638 = pneg %p290
      %p639 = pneg %p287
      %p640 = pneg %p311
      %p641 = pneg %p308
      %p642 = pneg %p332
      %p643 = pneg %p329
      %p644 = pneg %p353
      %p645 = pneg %p350
      %p646 = pneg %p374
      %p647 = pneg %p371
      %p648 = pneg %p395
      %p649 = pneg %p392
      %p650 = pneg %p416
      %p651 = pneg %p413
      %p652 = pneg %p437
      %p653 = pneg %p434
      %p654 = pneg %p458
      %p655 = pneg %p455
      %p656 = pneg %p484
      %p657 = pneg %p481
      %p658 = scmp.lt.s32.totalorder %s33, 1
      %s659 = scalar_select %p658, %s33, 1
      %s660 = smul.addr %s659, 2
      %s661 = smul.addr %s660, 8
      %s662 = scalar_lea.vmem %s20, %s661
      %p663 = pneg %p510
      %p664 = pneg %p507
      %p665 = scmp.lt.s32.totalorder %s33, 1
      %s666 = scalar_select %p665, %s33, 1
      %s667 = smul.addr %s666, 8
      %s668 = smul.addr %s667, 8
      %s669 = scalar_lea.vmem %s21, %s668
      %p670 = scmp.lt.s32.totalorder %s33, 1
      %s671 = scalar_select %p670, %s33, 1
      %s672 = smul.addr %s671, 2
      %s673 = smul.addr %s672, 8
      %s674 = scalar_lea.vmem %s0, %s673
      %p675 = scmp.lt.s32.totalorder %s33, 1
      %s676 = scalar_select %p675, %s33, 1
      %s677 = smul.addr %s676, 2
      %s678 = smul.addr %s677, 8
      %s679 = scalar_lea.vmem %s1, %s678
      %p680 = scmp.lt.s32.totalorder %s33, 1
      %s681 = scalar_select %p680, %s33, 1
      %s682 = smul.addr %s681, 2
      %s683 = smul.addr %s682, 8
      %s684 = scalar_lea.vmem %s20, %s683
      %p685 = scmp.lt.s32.totalorder %s33, 1
      %s686 = scalar_select %p685, %s33, 1
      %s687 = smul.addr %s686, 8
      %s688 = smul.addr %s687, 8
      %s689 = scalar_lea.vmem %s21, %s688
      %v690 = vld [vmem:[%s674] sm:$0xff]
      %v691 = vld [vmem:[%s674 + $0x8] sm:$0x1]
      %v692 = vld [vmem:[%s679] sm:$0xff]
      %v693 = vld [vmem:[%s679 + $0x8] sm:$0x1]
      %v694 = vld [vmem:[%s2] sm:$0xff]
      %v695 = vld [vmem:[%s2 + $0x8] sm:$0xff]
      %v696 = vld [vmem:[%s2 + $0x10] sm:$0xff]
      %v697 = vld [vmem:[%s2 + $0x18] sm:$0xff]
      %v698 = vld [vmem:[%s3] sm:$0x1]
      %v700 = vlaneseq
      %v701 = vshrl.u32 %v700, 7
      %v702 = vsub.s32 0, %v701
      %v703 = vrot.slane %v698, %v702
      %vm705 = vcmask 261120
      %v707 = vsel %vm705, %v690, 0
      %v710 = vsel %vm705, %v691, 0
      %712 = vmatprep.subr.mxu0 0.0
      %713 = vmatpush1.msra.mxu0 0.0
      %714 = vmatprep.subr.mxu0 0.0
      %715 = vmatpush1.msra.mxu0 0.0
      %716 = vmatprep.subr.mxu0 0.0
      %717 = vmatpush1.msra.mxu0 0.0
      %718 = vmatprep.subr.mxu0 0.0
      %719 = vmatpush1.msra.mxu0 0.0
      %720 = vmatprep.subr.mxu0 0.0
      %721 = vmatpush1.msra.mxu0 0.0
      %722 = vmatprep.subr.mxu0 0.0
      %723 = vmatpush1.msra.mxu0 0.0
      %724 = vmatprep.subr.mxu0 0.0
      %725 = vmatpush1.msra.mxu0 0.0
      %726 = vmatprep.subr.mxu0 0.0
      %727 = vmatpush1.msra.mxu0 0.0
      %728 = vmatprep.subr.mxu0 0.0
      %729 = vmatpush1.msra.mxu0 0.0
      %730 = vmatprep.subr.mxu0 0.0
      %731 = vmatpush1.msra.mxu0 0.0
      %732 = vmatprep.subr.mxu0 0.0
      %733 = vmatpush1.msra.mxu0 0.0
      %734 = vmatprep.subr.mxu0 0.0
      %735 = vmatpush1.msra.mxu0 0.0
      %736 = vmatprep.subr.mxu0 0.0
      %737 = vmatpush1.msra.mxu0 %v697
      %738 = vmatprep.subr.mxu0 0.0
      %739 = vmatpush1.msra.mxu0 %v696
      %740 = vmatprep.subr.mxu0 0.0
      %741 = vmatpush1.msra.mxu0 %v695
      %742 = vmatprep.subr.mxu0 0.0
      %743 = vmatpush1.msra.mxu0 %v694
      %744 = vmatprep.subr.mxu0 0.0
      %745 = vmatpush2.msra.mxu0 0.0
      %746 = vmatprep.subr.mxu0 0.0
      %747 = vmatpush2.msra.mxu0 0.0
      %748 = vmatprep.subr.mxu0 0.0
      %749 = vmatpush2.msra.mxu0 0.0
      %750 = vmatprep.subr.mxu0 0.0
      %751 = vmatpush2.msra.mxu0 0.0
      %752 = vmatprep.subr.mxu0 0.0
      %753 = vmatpush2.msra.mxu0 0.0
      %754 = vmatprep.subr.mxu0 0.0
      %755 = vmatpush2.msra.mxu0 0.0
      %756 = vmatprep.subr.mxu0 0.0
      %757 = vmatpush2.msra.mxu0 0.0
      %758 = vmatprep.subr.mxu0 0.0
      %759 = vmatpush2.msra.mxu0 0.0
      %760 = vmatprep.subr.mxu0 0.0
      %761 = vmatpush2.msra.mxu0 0.0
      %762 = vmatprep.subr.mxu0 0.0
      %763 = vmatpush2.msra.mxu0 0.0
      %764 = vmatprep.subr.mxu0 0.0
      %765 = vmatpush2.msra.mxu0 0.0
      %766 = vmatprep.subr.mxu0 0.0
      %767 = vmatpush2.msra.mxu0 0.0
      %768 = vmatprep.subr.mxu0 0.0
      %769 = vmatpush2.msra.mxu0 0.0
      %770 = vmatprep.subr.mxu0 0.0
      %771 = vmatpush2.msra.mxu0 0.0
      %772 = vmatprep.subr.mxu0 0.0
      %773 = vmatpush2.msra.mxu0 0.0
      %774 = vmatprep.subr.mxu0 0.0
      %775 = vmatpush2.msra.mxu0 0.0
      %776 = vmatprep.mubr.f32.mxu0 0.0
      %777 = vmatmul.mubr.f32.gmra.mxu0 %v707
      %v778 = vpop.f32.mrf.mxu0
      %v779 = vadd.f32 %v703, %v778
      %v780 = vpop.f32.mrf.mxu0
      %781 = vmatprep.mubr.f32.mxu0 0.0
      %782 = vmatmul.mubr.f32.gmra.mxu0 %v710
      %v783 = vpop.f32.mrf.mxu0
      %v784 = vadd.f32 %v703, %v783
      %v785 = vpop.f32.mrf.mxu0
      %786 = vdwg.mxu0
      %v787 = vld [vmem:[%s4] sm:$0xff]
      %v788 = vld [vmem:[%s4 + $0x8] sm:$0xff]
      %v789 = vld [vmem:[%s4 + $0x10] sm:$0xff]
      %v790 = vld [vmem:[%s4 + $0x18] sm:$0xff]
      %v791 = vld [vmem:[%s5] sm:$0x1]
      %v793 = vlaneseq
      %v794 = vshrl.u32 %v793, 7
      %v795 = vsub.s32 0, %v794
      %v796 = vrot.slane %v791, %v795
      %798 = vmatprep.subr.mxu0 0.0
      %799 = vmatpush1.msra.mxu0 0.0
      %800 = vmatprep.subr.mxu0 0.0
      %801 = vmatpush1.msra.mxu0 0.0
      %802 = vmatprep.subr.mxu0 0.0
      %803 = vmatpush1.msra.mxu0 0.0
      %804 = vmatprep.subr.mxu0 0.0
      %805 = vmatpush1.msra.mxu0 0.0
      %806 = vmatprep.subr.mxu0 0.0
      %807 = vmatpush1.msra.mxu0 0.0
      %808 = vmatprep.subr.mxu0 0.0
      %809 = vmatpush1.msra.mxu0 0.0
      %810 = vmatprep.subr.mxu0 0.0
      %811 = vmatpush1.msra.mxu0 0.0
      %812 = vmatprep.subr.mxu0 0.0
      %813 = vmatpush1.msra.mxu0 0.0
      %814 = vmatprep.subr.mxu0 0.0
      %815 = vmatpush1.msra.mxu0 0.0
      %816 = vmatprep.subr.mxu0 0.0
      %817 = vmatpush1.msra.mxu0 0.0
      %818 = vmatprep.subr.mxu0 0.0
      %819 = vmatpush1.msra.mxu0 0.0
      %820 = vmatprep.subr.mxu0 0.0
      %821 = vmatpush1.msra.mxu0 0.0
      %822 = vmatprep.subr.mxu0 0.0
      %823 = vmatpush1.msra.mxu0 %v790
      %824 = vmatprep.subr.mxu0 0.0
      %825 = vmatpush1.msra.mxu0 %v789
      %826 = vmatprep.subr.mxu0 0.0
      %827 = vmatpush1.msra.mxu0 %v788
      %828 = vmatprep.subr.mxu0 0.0
      %829 = vmatpush1.msra.mxu0 %v787
      %830 = vmatprep.subr.mxu0 0.0
      %831 = vmatpush2.msra.mxu0 0.0
      %832 = vmatprep.subr.mxu0 0.0
      %833 = vmatpush2.msra.mxu0 0.0
      %834 = vmatprep.subr.mxu0 0.0
      %835 = vmatpush2.msra.mxu0 0.0
      %836 = vmatprep.subr.mxu0 0.0
      %837 = vmatpush2.msra.mxu0 0.0
      %838 = vmatprep.subr.mxu0 0.0
      %839 = vmatpush2.msra.mxu0 0.0
      %840 = vmatprep.subr.mxu0 0.0
      %841 = vmatpush2.msra.mxu0 0.0
      %842 = vmatprep.subr.mxu0 0.0
      %843 = vmatpush2.msra.mxu0 0.0
      %844 = vmatprep.subr.mxu0 0.0
      %845 = vmatpush2.msra.mxu0 0.0
      %846 = vmatprep.subr.mxu0 0.0
      %847 = vmatpush2.msra.mxu0 0.0
      %848 = vmatprep.subr.mxu0 0.0
      %849 = vmatpush2.msra.mxu0 0.0
      %850 = vmatprep.subr.mxu0 0.0
      %851 = vmatpush2.msra.mxu0 0.0
      %852 = vmatprep.subr.mxu0 0.0
      %853 = vmatpush2.msra.mxu0 0.0
      %854 = vmatprep.subr.mxu0 0.0
      %855 = vmatpush2.msra.mxu0 0.0
      %856 = vmatprep.subr.mxu0 0.0
      %857 = vmatpush2.msra.mxu0 0.0
      %858 = vmatprep.subr.mxu0 0.0
      %859 = vmatpush2.msra.mxu0 0.0
      %860 = vmatprep.subr.mxu0 0.0
      %861 = vmatpush2.msra.mxu0 0.0
      %862 = vmatprep.mubr.f32.mxu0 0.0
      %863 = vmatmul.mubr.f32.gmra.mxu0 %v707
      %v864 = vpop.f32.mrf.mxu0
      %v865 = vadd.f32 %v796, %v864
      %v866 = vpop.f32.mrf.mxu0
      %867 = vmatprep.mubr.f32.mxu0 0.0
      %868 = vmatmul.mubr.f32.gmra.mxu0 %v710
      %v869 = vpop.f32.mrf.mxu0
      %v870 = vadd.f32 %v796, %v869
      %v871 = vpop.f32.mrf.mxu0
      %872 = vdwg.mxu0
      %v873 = vld [vmem:[%s6] sm:$0xff]
      %v874 = vld [vmem:[%s6 + $0x8] sm:$0xff]
      %v875 = vld [vmem:[%s6 + $0x10] sm:$0xff]
      %v876 = vld [vmem:[%s6 + $0x18] sm:$0xff]
      %v877 = vld [vmem:[%s7] sm:$0x1]
      %v879 = vlaneseq
      %v880 = vshrl.u32 %v879, 7
      %v881 = vsub.s32 0, %v880
      %v882 = vrot.slane %v877, %v881
      %884 = vmatprep.subr.mxu0 0.0
      %885 = vmatpush1.msra.mxu0 0.0
      %886 = vmatprep.subr.mxu0 0.0
      %887 = vmatpush1.msra.mxu0 0.0
      %888 = vmatprep.subr.mxu0 0.0
      %889 = vmatpush1.msra.mxu0 0.0
      %890 = vmatprep.subr.mxu0 0.0
      %891 = vmatpush1.msra.mxu0 0.0
      %892 = vmatprep.subr.mxu0 0.0
      %893 = vmatpush1.msra.mxu0 0.0
      %894 = vmatprep.subr.mxu0 0.0
      %895 = vmatpush1.msra.mxu0 0.0
      %896 = vmatprep.subr.mxu0 0.0
      %897 = vmatpush1.msra.mxu0 0.0
      %898 = vmatprep.subr.mxu0 0.0
      %899 = vmatpush1.msra.mxu0 0.0
      %900 = vmatprep.subr.mxu0 0.0
      %901 = vmatpush1.msra.mxu0 0.0
      %902 = vmatprep.subr.mxu0 0.0
      %903 = vmatpush1.msra.mxu0 0.0
      %904 = vmatprep.subr.mxu0 0.0
      %905 = vmatpush1.msra.mxu0 0.0
      %906 = vmatprep.subr.mxu0 0.0
      %907 = vmatpush1.msra.mxu0 0.0
      %908 = vmatprep.subr.mxu0 0.0
      %909 = vmatpush1.msra.mxu0 %v876
      %910 = vmatprep.subr.mxu0 0.0
      %911 = vmatpush1.msra.mxu0 %v875
      %912 = vmatprep.subr.mxu0 0.0
      %913 = vmatpush1.msra.mxu0 %v874
      %914 = vmatprep.subr.mxu0 0.0
      %915 = vmatpush1.msra.mxu0 %v873
      %916 = vmatprep.subr.mxu0 0.0
      %917 = vmatpush2.msra.mxu0 0.0
      %918 = vmatprep.subr.mxu0 0.0
      %919 = vmatpush2.msra.mxu0 0.0
      %920 = vmatprep.subr.mxu0 0.0
      %921 = vmatpush2.msra.mxu0 0.0
      %922 = vmatprep.subr.mxu0 0.0
      %923 = vmatpush2.msra.mxu0 0.0
      %924 = vmatprep.subr.mxu0 0.0
      %925 = vmatpush2.msra.mxu0 0.0
      %926 = vmatprep.subr.mxu0 0.0
      %927 = vmatpush2.msra.mxu0 0.0
      %928 = vmatprep.subr.mxu0 0.0
      %929 = vmatpush2.msra.mxu0 0.0
      %930 = vmatprep.subr.mxu0 0.0
      %931 = vmatpush2.msra.mxu0 0.0
      %932 = vmatprep.subr.mxu0 0.0
      %933 = vmatpush2.msra.mxu0 0.0
      %934 = vmatprep.subr.mxu0 0.0
      %935 = vmatpush2.msra.mxu0 0.0
      %936 = vmatprep.subr.mxu0 0.0
      %937 = vmatpush2.msra.mxu0 0.0
      %938 = vmatprep.subr.mxu0 0.0
      %939 = vmatpush2.msra.mxu0 0.0
      %940 = vmatprep.subr.mxu0 0.0
      %941 = vmatpush2.msra.mxu0 0.0
      %942 = vmatprep.subr.mxu0 0.0
      %943 = vmatpush2.msra.mxu0 0.0
      %944 = vmatprep.subr.mxu0 0.0
      %945 = vmatpush2.msra.mxu0 0.0
      %946 = vmatprep.subr.mxu0 0.0
      %947 = vmatpush2.msra.mxu0 0.0
      %948 = vmatprep.mubr.f32.mxu0 0.0
      %949 = vmatmul.mubr.f32.gmra.mxu0 %v707
      %v950 = vpop.f32.mrf.mxu0
      %v951 = vadd.f32 %v882, %v950
      %v952 = vpop.f32.mrf.mxu0
      %953 = vmatprep.mubr.f32.mxu0 0.0
      %954 = vmatmul.mubr.f32.gmra.mxu0 %v710
      %v955 = vpop.f32.mrf.mxu0
      %v956 = vadd.f32 %v882, %v955
      %v957 = vpop.f32.mrf.mxu0
      %958 = vdwg.mxu0
      %vm959 = vcmask 64512
      %v961 = vsel %vm959, %v779, 0
      %v964 = vsel %vm959, %v784, 0
      %v967 = vsel %vm959, %v865, 0
      %v970 = vsel %vm959, %v870, 0
      %972 = vmatprep.subr.mxu0 0.0
      %973 = vmatpush1.xpose.msra.mxu0 0.0
      %974 = vmatprep.subr.mxu0 0.0
      %975 = vmatpush1.xpose.msra.mxu0 0.0
      %976 = vmatprep.subr.mxu0 0.0
      %977 = vmatpush1.xpose.msra.mxu0 0.0
      %978 = vmatprep.subr.mxu0 0.0
      %979 = vmatpush1.xpose.msra.mxu0 0.0
      %980 = vmatprep.subr.mxu0 0.0
      %981 = vmatpush1.xpose.msra.mxu0 0.0
      %982 = vmatprep.subr.mxu0 0.0
      %983 = vmatpush1.xpose.msra.mxu0 0.0
      %984 = vmatprep.subr.mxu0 0.0
      %985 = vmatpush1.xpose.msra.mxu0 0.0
      %986 = vmatprep.subr.mxu0 0.0
      %987 = vmatpush1.xpose.msra.mxu0 0.0
      %988 = vmatprep.subr.mxu0 0.0
      %989 = vmatpush1.xpose.msra.mxu0 0.0
      %990 = vmatprep.subr.mxu0 0.0
      %991 = vmatpush1.xpose.msra.mxu0 0.0
      %992 = vmatprep.subr.mxu0 0.0
      %993 = vmatpush1.xpose.msra.mxu0 0.0
      %994 = vmatprep.subr.mxu0 0.0
      %995 = vmatpush1.xpose.msra.mxu0 0.0
      %996 = vmatprep.subr.mxu0 0.0
      %997 = vmatpush1.xpose.msra.mxu0 0.0
      %998 = vmatprep.subr.mxu0 0.0
      %999 = vmatpush1.xpose.msra.mxu0 0.0
      %1000 = vmatprep.subr.mxu0 0.0
      %1001 = vmatpush1.xpose.msra.mxu0 %v970
      %1002 = vmatprep.subr.mxu0 0.0
      %1003 = vmatpush1.xpose.msra.mxu0 %v967
      %1004 = vmatprep.subr.mxu0 0.0
      %1005 = vmatpush2.xpose.msra.mxu0 0.0
      %1006 = vmatprep.subr.mxu0 0.0
      %1007 = vmatpush2.xpose.msra.mxu0 0.0
      %1008 = vmatprep.subr.mxu0 0.0
      %1009 = vmatpush2.xpose.msra.mxu0 0.0
      %1010 = vmatprep.subr.mxu0 0.0
      %1011 = vmatpush2.xpose.msra.mxu0 0.0
      %1012 = vmatprep.subr.mxu0 0.0
      %1013 = vmatpush2.xpose.msra.mxu0 0.0
      %1014 = vmatprep.subr.mxu0 0.0
      %1015 = vmatpush2.xpose.msra.mxu0 0.0
      %1016 = vmatprep.subr.mxu0 0.0
      %1017 = vmatpush2.xpose.msra.mxu0 0.0
      %1018 = vmatprep.subr.mxu0 0.0
      %1019 = vmatpush2.xpose.msra.mxu0 0.0
      %1020 = vmatprep.subr.mxu0 0.0
      %1021 = vmatpush2.xpose.msra.mxu0 0.0
      %1022 = vmatprep.subr.mxu0 0.0
      %1023 = vmatpush2.xpose.msra.mxu0 0.0
      %1024 = vmatprep.subr.mxu0 0.0
      %1025 = vmatpush2.xpose.msra.mxu0 0.0
      %1026 = vmatprep.subr.mxu0 0.0
      %1027 = vmatpush2.xpose.msra.mxu0 0.0
      %1028 = vmatprep.subr.mxu0 0.0
      %1029 = vmatpush2.xpose.msra.mxu0 0.0
      %1030 = vmatprep.subr.mxu0 0.0
      %1031 = vmatpush2.xpose.msra.mxu0 0.0
      %1032 = vmatprep.subr.mxu0 0.0
      %1033 = vmatpush2.xpose.msra.mxu0 0.0
      %1034 = vmatprep.subr.mxu0 0.0
      %1035 = vmatpush2.xpose.msra.mxu0 0.0
      %1036 = vmatprep.mubr.f32.mxu0 0.0
      %1037 = vmatmul.mubr.f32.gmra.mxu0 %v961
      %v1038 = vpop.f32.mrf.mxu0
      %v1039 = vadd.f32 0.0, %v1038
      %v1040 = vpop.f32.mrf.mxu0
      %1041 = vmatprep.mubr.f32.mxu0 0.0
      %1042 = vmatmul.mubr.f32.gmra.mxu0 %v964
      %v1043 = vpop.f32.mrf.mxu0
      %v1044 = vadd.f32 0.0, %v1043
      %v1045 = vpop.f32.mrf.mxu0
      %1046 = vdwg.mxu0
      %v1047 = vmul.f32 %v1039, 0.35355338
      %v1048 = vmul.f32 %v1044, 0.35355338
      %v1049 = vadd.f32 %v1047, %v692
      %v1050 = vadd.f32 %v1048, %v693
      %vm1051 = vcmask 72704
      %v1052 = vsel %vm1051, %v1049, -inf
      %1053 = vmax.xlane.f32.xlu0 %v1052
      %v1054 = vpop.xlane.xlu0 %1053
      %vm1055 = vcmask 65536
      %v1056 = vsel %vm1055, %v1050, -inf
      %1057 = vmax.xlane.f32.xlu0 %v1056
      %v1058 = vpop.xlane.xlu0 %1057
      %v1059 = vsub.f32 %v1049, %v1054
      %v1060 = vsub.f32 %v1050, %v1058
      %v1061 = vmul.f32 %v1059, 1.442695
      %v1062 = vpow.pop %v1061
      %v1063 = vmul.f32 %v1060, 1.442695
      %v1064 = vpow.pop %v1063
      %v1065 = vsel %vm1051, %v1062, 0.0
      %1066 = vadd.xlane.f32.xlu0 %v1065
      %v1067 = vpop.xlane.xlu0 %1066
      %v1068 = vsel %vm1055, %v1064, 0.0
      %1069 = vadd.xlane.f32.xlu0 %v1068
      %v1070 = vpop.xlane.xlu0 %1069
      %v1071 = vrcp.pop %v1067
      %v1072 = vrcp.pop %v1070
      %v1073 = vmul.f32 %v1062, %v1071
      %v1074 = vmul.f32 %v1064, %v1072
      %1075 = vst.msk [vmem:[%s689] sm:$0xff] %vm1051, %v1073
      %1076 = vst.msk [vmem:[%s689 + $0x8] sm:$0x1] %vm1055, %v1074
      %v1078 = vsel %vm1051, %v1073, 0
      %v1081 = vsel %vm1051, %v1074, 0
      %vm1083 = vcmask 1040384
      %v1085 = vsel %vm1083, %v956, 0
      %1087 = vmatprep.subr.mxu0 0.0
      %1088 = vmatpush1.msra.mxu0 0.0
      %1089 = vmatprep.subr.mxu0 0.0
      %1090 = vmatpush1.msra.mxu0 0.0
      %1091 = vmatprep.subr.mxu0 0.0
      %1092 = vmatpush1.msra.mxu0 0.0
      %1093 = vmatprep.subr.mxu0 0.0
      %1094 = vmatpush1.msra.mxu0 0.0
      %1095 = vmatprep.subr.mxu0 0.0
      %1096 = vmatpush1.msra.mxu0 0.0
      %1097 = vmatprep.subr.mxu0 0.0
      %1098 = vmatpush1.msra.mxu0 0.0
      %1099 = vmatprep.subr.mxu0 0.0
      %1100 = vmatpush1.msra.mxu0 0.0
      %1101 = vmatprep.subr.mxu0 0.0
      %1102 = vmatpush1.msra.mxu0 0.0
      %1103 = vmatprep.subr.mxu0 0.0
      %1104 = vmatpush1.msra.mxu0 0.0
      %1105 = vmatprep.subr.mxu0 0.0
      %1106 = vmatpush1.msra.mxu0 0.0
      %1107 = vmatprep.subr.mxu0 0.0
      %1108 = vmatpush1.msra.mxu0 0.0
      %1109 = vmatprep.subr.mxu0 0.0
      %1110 = vmatpush1.msra.mxu0 0.0
      %1111 = vmatprep.subr.mxu0 0.0
      %1112 = vmatpush1.msra.mxu0 0.0
      %1113 = vmatprep.subr.mxu0 0.0
      %1114 = vmatpush1.msra.mxu0 0.0
      %1115 = vmatprep.subr.mxu0 0.0
      %1116 = vmatpush1.msra.mxu0 %v1085
      %1117 = vmatprep.subr.mxu0 0.0
      %1118 = vmatpush1.msra.mxu0 %v951
      %1119 = vmatprep.subr.mxu0 0.0
      %1120 = vmatpush2.msra.mxu0 0.0
      %1121 = vmatprep.subr.mxu0 0.0
      %1122 = vmatpush2.msra.mxu0 0.0
      %1123 = vmatprep.subr.mxu0 0.0
      %1124 = vmatpush2.msra.mxu0 0.0
      %1125 = vmatprep.subr.mxu0 0.0
      %1126 = vmatpush2.msra.mxu0 0.0
      %1127 = vmatprep.subr.mxu0 0.0
      %1128 = vmatpush2.msra.mxu0 0.0
      %1129 = vmatprep.subr.mxu0 0.0
      %1130 = vmatpush2.msra.mxu0 0.0
      %1131 = vmatprep.subr.mxu0 0.0
      %1132 = vmatpush2.msra.mxu0 0.0
      %1133 = vmatprep.subr.mxu0 0.0
      %1134 = vmatpush2.msra.mxu0 0.0
      %1135 = vmatprep.subr.mxu0 0.0
      %1136 = vmatpush2.msra.mxu0 0.0
      %1137 = vmatprep.subr.mxu0 0.0
      %1138 = vmatpush2.msra.mxu0 0.0
      %1139 = vmatprep.subr.mxu0 0.0
      %1140 = vmatpush2.msra.mxu0 0.0
      %1141 = vmatprep.subr.mxu0 0.0
      %1142 = vmatpush2.msra.mxu0 0.0
      %1143 = vmatprep.subr.mxu0 0.0
      %1144 = vmatpush2.msra.mxu0 0.0
      %1145 = vmatprep.subr.mxu0 0.0
      %1146 = vmatpush2.msra.mxu0 0.0
      %1147 = vmatprep.subr.mxu0 0.0
      %1148 = vmatpush2.msra.mxu0 0.0
      %1149 = vmatprep.subr.mxu0 0.0
      %1150 = vmatpush2.msra.mxu0 0.0
      %1151 = vmatprep.mubr.f32.mxu0 0.0
      %1152 = vmatmul.mubr.f32.gmra.mxu0 %v1078
      %v1153 = vpop.f32.mrf.mxu0
      %v1154 = vadd.f32 0.0, %v1153
      %v1155 = vpop.f32.mrf.mxu0
      %1156 = vmatprep.mubr.f32.mxu0 0.0
      %1157 = vmatmul.mubr.f32.gmra.mxu0 %v1081
      %v1158 = vpop.f32.mrf.mxu0
      %v1159 = vadd.f32 0.0, %v1158
      %v1160 = vpop.f32.mrf.mxu0
      %1161 = vdwg.mxu0
      %1162 = vst.msk [vmem:[#allocation2] sm:$0xff] %vm959, %v1154
      %vm1163 = vcmask 57344
      %1164 = vst.msk [vmem:[#allocation2 + $0x8] sm:$0x1] %vm1163, %v1159
      %1165 = vrot.lane.b32.xlu0 %v779, 120
      %v1166 = vpop.permute.xlu0 %1165
      %1167 = vrot.lane.b32.xlu0 %v784, 120
      %v1168 = vpop.permute.xlu0 %1167
      %1169 = vrot.lane.b32.xlu0 %v865, 120
      %v1170 = vpop.permute.xlu0 %1169
      %1171 = vrot.lane.b32.xlu0 %v870, 120
      %v1172 = vpop.permute.xlu0 %1171
      %v1173 = vsel %vm959, %v1166, 0
      %v1175 = vsel %vm959, %v1168, 0
      %v1177 = vsel %vm959, %v1170, 0
      %v1179 = vsel %vm959, %v1172, 0
      %1181 = vmatprep.subr.mxu0 0.0
      %1182 = vmatpush1.xpose.msra.mxu0 0.0
      %1183 = vmatprep.subr.mxu0 0.0
      %1184 = vmatpush1.xpose.msra.mxu0 0.0
      %1185 = vmatprep.subr.mxu0 0.0
      %1186 = vmatpush1.xpose.msra.mxu0 0.0
      %1187 = vmatprep.subr.mxu0 0.0
      %1188 = vmatpush1.xpose.msra.mxu0 0.0
      %1189 = vmatprep.subr.mxu0 0.0
      %1190 = vmatpush1.xpose.msra.mxu0 0.0
      %1191 = vmatprep.subr.mxu0 0.0
      %1192 = vmatpush1.xpose.msra.mxu0 0.0
      %1193 = vmatprep.subr.mxu0 0.0
      %1194 = vmatpush1.xpose.msra.mxu0 0.0
      %1195 = vmatprep.subr.mxu0 0.0
      %1196 = vmatpush1.xpose.msra.mxu0 0.0
      %1197 = vmatprep.subr.mxu0 0.0
      %1198 = vmatpush1.xpose.msra.mxu0 0.0
      %1199 = vmatprep.subr.mxu0 0.0
      %1200 = vmatpush1.xpose.msra.mxu0 0.0
      %1201 = vmatprep.subr.mxu0 0.0
      %1202 = vmatpush1.xpose.msra.mxu0 0.0
      %1203 = vmatprep.subr.mxu0 0.0
      %1204 = vmatpush1.xpose.msra.mxu0 0.0
      %1205 = vmatprep.subr.mxu0 0.0
      %1206 = vmatpush1.xpose.msra.mxu0 0.0
      %1207 = vmatprep.subr.mxu0 0.0
      %1208 = vmatpush1.xpose.msra.mxu0 0.0
      %1209 = vmatprep.subr.mxu0 0.0
      %1210 = vmatpush1.xpose.msra.mxu0 %v1179
      %1211 = vmatprep.subr.mxu0 0.0
      %1212 = vmatpush1.xpose.msra.mxu0 %v1177
      %1213 = vmatprep.subr.mxu0 0.0
      %1214 = vmatpush2.xpose.msra.mxu0 0.0
      %1215 = vmatprep.subr.mxu0 0.0
      %1216 = vmatpush2.xpose.msra.mxu0 0.0
      %1217 = vmatprep.subr.mxu0 0.0
      %1218 = vmatpush2.xpose.msra.mxu0 0.0
      %1219 = vmatprep.subr.mxu0 0.0
      %1220 = vmatpush2.xpose.msra.mxu0 0.0
      %1221 = vmatprep.subr.mxu0 0.0
      %1222 = vmatpush2.xpose.msra.mxu0 0.0
      %1223 = vmatprep.subr.mxu0 0.0
      %1224 = vmatpush2.xpose.msra.mxu0 0.0
      %1225 = vmatprep.subr.mxu0 0.0
      %1226 = vmatpush2.xpose.msra.mxu0 0.0
      %1227 = vmatprep.subr.mxu0 0.0
      %1228 = vmatpush2.xpose.msra.mxu0 0.0
      %1229 = vmatprep.subr.mxu0 0.0
      %1230 = vmatpush2.xpose.msra.mxu0 0.0
      %1231 = vmatprep.subr.mxu0 0.0
      %1232 = vmatpush2.xpose.msra.mxu0 0.0
      %1233 = vmatprep.subr.mxu0 0.0
      %1234 = vmatpush2.xpose.msra.mxu0 0.0
      %1235 = vmatprep.subr.mxu0 0.0
      %1236 = vmatpush2.xpose.msra.mxu0 0.0
      %1237 = vmatprep.subr.mxu0 0.0
      %1238 = vmatpush2.xpose.msra.mxu0 0.0
      %1239 = vmatprep.subr.mxu0 0.0
      %1240 = vmatpush2.xpose.msra.mxu0 0.0
      %1241 = vmatprep.subr.mxu0 0.0
      %1242 = vmatpush2.xpose.msra.mxu0 0.0
      %1243 = vmatprep.subr.mxu0 0.0
      %1244 = vmatpush2.xpose.msra.mxu0 0.0
      %1245 = vmatprep.mubr.f32.mxu0 0.0
      %1246 = vmatmul.mubr.f32.gmra.mxu0 %v1173
      %v1247 = vpop.f32.mrf.mxu0
      %v1248 = vadd.f32 0.0, %v1247
      %v1249 = vpop.f32.mrf.mxu0
      %1250 = vmatprep.mubr.f32.mxu0 0.0
      %1251 = vmatmul.mubr.f32.gmra.mxu0 %v1175
      %v1252 = vpop.f32.mrf.mxu0
      %v1253 = vadd.f32 0.0, %v1252
      %v1254 = vpop.f32.mrf.mxu0
      %1255 = vdwg.mxu0
      %v1256 = vmul.f32 %v1248, 0.35355338
      %v1257 = vmul.f32 %v1253, 0.35355338
      %v1258 = vadd.f32 %v1256, %v692
      %v1259 = vadd.f32 %v1257, %v693
      %v1260 = vsel %vm1051, %v1258, -inf
      %1261 = vmax.xlane.f32.xlu0 %v1260
      %v1262 = vpop.xlane.xlu0 %1261
      %v1263 = vsel %vm1055, %v1259, -inf
      %1264 = vmax.xlane.f32.xlu0 %v1263
      %v1265 = vpop.xlane.xlu0 %1264
      %v1266 = vsub.f32 %v1258, %v1262
      %v1267 = vsub.f32 %v1259, %v1265
      %v1268 = vmul.f32 %v1266, 1.442695
      %v1269 = vpow.pop %v1268
      %v1270 = vmul.f32 %v1267, 1.442695
      %v1271 = vpow.pop %v1270
      %v1272 = vsel %vm1051, %v1269, 0.0
      %1273 = vadd.xlane.f32.xlu0 %v1272
      %v1274 = vpop.xlane.xlu0 %1273
      %v1275 = vsel %vm1055, %v1271, 0.0
      %1276 = vadd.xlane.f32.xlu0 %v1275
      %v1277 = vpop.xlane.xlu0 %1276
      %v1278 = vrcp.pop %v1274
      %v1279 = vrcp.pop %v1277
      %v1280 = vmul.f32 %v1269, %v1278
      %v1281 = vmul.f32 %v1271, %v1279
      %s1282 = scalar_lea.vmem %s689, 16
      %1283 = vst.msk [vmem:[%s1282] sm:$0xff] %vm1051, %v1280
      %1284 = vst.msk [vmem:[%s1282 + $0x8] sm:$0x1] %vm1055, %v1281
      %1286 = vrot.lane.b32.xlu0 %v951, 120
      %v1287 = vpop.permute.xlu0 %1286
      %1288 = vrot.lane.b32.xlu0 %v956, 120
      %v1289 = vpop.permute.xlu0 %1288
      %v1292 = vsel %vm1051, %v1280, 0
      %v1295 = vsel %vm1051, %v1281, 0
      %v1297 = vsel %vm1083, %v1289, 0
      %1299 = vmatprep.subr.mxu0 0.0
      %1300 = vmatpush1.msra.mxu0 0.0
      %1301 = vmatprep.subr.mxu0 0.0
      %1302 = vmatpush1.msra.mxu0 0.0
      %1303 = vmatprep.subr.mxu0 0.0
      %1304 = vmatpush1.msra.mxu0 0.0
      %1305 = vmatprep.subr.mxu0 0.0
      %1306 = vmatpush1.msra.mxu0 0.0
      %1307 = vmatprep.subr.mxu0 0.0
      %1308 = vmatpush1.msra.mxu0 0.0
      %1309 = vmatprep.subr.mxu0 0.0
      %1310 = vmatpush1.msra.mxu0 0.0
      %1311 = vmatprep.subr.mxu0 0.0
      %1312 = vmatpush1.msra.mxu0 0.0
      %1313 = vmatprep.subr.mxu0 0.0
      %1314 = vmatpush1.msra.mxu0 0.0
      %1315 = vmatprep.subr.mxu0 0.0
      %1316 = vmatpush1.msra.mxu0 0.0
      %1317 = vmatprep.subr.mxu0 0.0
      %1318 = vmatpush1.msra.mxu0 0.0
      %1319 = vmatprep.subr.mxu0 0.0
      %1320 = vmatpush1.msra.mxu0 0.0
      %1321 = vmatprep.subr.mxu0 0.0
      %1322 = vmatpush1.msra.mxu0 0.0
      %1323 = vmatprep.subr.mxu0 0.0
      %1324 = vmatpush1.msra.mxu0 0.0
      %1325 = vmatprep.subr.mxu0 0.0
      %1326 = vmatpush1.msra.mxu0 0.0
      %1327 = vmatprep.subr.mxu0 0.0
      %1328 = vmatpush1.msra.mxu0 %v1297
      %1329 = vmatprep.subr.mxu0 0.0
      %1330 = vmatpush1.msra.mxu0 %v1287
      %1331 = vmatprep.subr.mxu0 0.0
      %1332 = vmatpush2.msra.mxu0 0.0
      %1333 = vmatprep.subr.mxu0 0.0
      %1334 = vmatpush2.msra.mxu0 0.0
      %1335 = vmatprep.subr.mxu0 0.0
      %1336 = vmatpush2.msra.mxu0 0.0
      %1337 = vmatprep.subr.mxu0 0.0
      %1338 = vmatpush2.msra.mxu0 0.0
      %1339 = vmatprep.subr.mxu0 0.0
      %1340 = vmatpush2.msra.mxu0 0.0
      %1341 = vmatprep.subr.mxu0 0.0
      %1342 = vmatpush2.msra.mxu0 0.0
      %1343 = vmatprep.subr.mxu0 0.0
      %1344 = vmatpush2.msra.mxu0 0.0
      %1345 = vmatprep.subr.mxu0 0.0
      %1346 = vmatpush2.msra.mxu0 0.0
      %1347 = vmatprep.subr.mxu0 0.0
      %1348 = vmatpush2.msra.mxu0 0.0
      %1349 = vmatprep.subr.mxu0 0.0
      %1350 = vmatpush2.msra.mxu0 0.0
      %1351 = vmatprep.subr.mxu0 0.0
      %1352 = vmatpush2.msra.mxu0 0.0
      %1353 = vmatprep.subr.mxu0 0.0
      %1354 = vmatpush2.msra.mxu0 0.0
      %1355 = vmatprep.subr.mxu0 0.0
      %1356 = vmatpush2.msra.mxu0 0.0
      %1357 = vmatprep.subr.mxu0 0.0
      %1358 = vmatpush2.msra.mxu0 0.0
      %1359 = vmatprep.subr.mxu0 0.0
      %1360 = vmatpush2.msra.mxu0 0.0
      %1361 = vmatprep.subr.mxu0 0.0
      %1362 = vmatpush2.msra.mxu0 0.0
      %1363 = vmatprep.mubr.f32.mxu0 0.0
      %1364 = vmatmul.mubr.f32.gmra.mxu0 %v1292
      %v1365 = vpop.f32.mrf.mxu0
      %v1366 = vadd.f32 0.0, %v1365
      %v1367 = vpop.f32.mrf.mxu0
      %1368 = vmatprep.mubr.f32.mxu0 0.0
      %1369 = vmatmul.mubr.f32.gmra.mxu0 %v1295
      %v1370 = vpop.f32.mrf.mxu0
      %v1371 = vadd.f32 0.0, %v1370
      %v1372 = vpop.f32.mrf.mxu0
      %1373 = vdwg.mxu0
      %1376 = vrot.lane.b32.xlu0 %v1366, 8
      %v1377 = vpop.permute.xlu0 %1376
      %1378 = vrot.lane.b32.xlu0 %v1371, 8
      %v1379 = vpop.permute.xlu0 %1378
      %vm1382 = vcmask 130112
      %1383 = vst.msk [vmem:[#allocation2] sm:$0xff] %vm1382, %v1377
      %vm1384 = vcmask 122944
      %1385 = vst.msk [vmem:[#allocation2 + $0x8] sm:$0x1] %vm1384, %v1379
      %1386 = vrot.lane.b32.xlu0 %v779, 112
      %v1387 = vpop.permute.xlu0 %1386
      %1388 = vrot.lane.b32.xlu0 %v784, 112
      %v1389 = vpop.permute.xlu0 %1388
      %1390 = vrot.lane.b32.xlu0 %v865, 112
      %v1391 = vpop.permute.xlu0 %1390
      %1392 = vrot.lane.b32.xlu0 %v870, 112
      %v1393 = vpop.permute.xlu0 %1392
      %v1394 = vsel %vm959, %v1387, 0
      %v1396 = vsel %vm959, %v1389, 0
      %v1398 = vsel %vm959, %v1391, 0
      %v1400 = vsel %vm959, %v1393, 0
      %1402 = vmatprep.subr.mxu0 0.0
      %1403 = vmatpush1.xpose.msra.mxu0 0.0
      %1404 = vmatprep.subr.mxu0 0.0
      %1405 = vmatpush1.xpose.msra.mxu0 0.0
      %1406 = vmatprep.subr.mxu0 0.0
      %1407 = vmatpush1.xpose.msra.mxu0 0.0
      %1408 = vmatprep.subr.mxu0 0.0
      %1409 = vmatpush1.xpose.msra.mxu0 0.0
      %1410 = vmatprep.subr.mxu0 0.0
      %1411 = vmatpush1.xpose.msra.mxu0 0.0
      %1412 = vmatprep.subr.mxu0 0.0
      %1413 = vmatpush1.xpose.msra.mxu0 0.0
      %1414 = vmatprep.subr.mxu0 0.0
      %1415 = vmatpush1.xpose.msra.mxu0 0.0
      %1416 = vmatprep.subr.mxu0 0.0
      %1417 = vmatpush1.xpose.msra.mxu0 0.0
      %1418 = vmatprep.subr.mxu0 0.0
      %1419 = vmatpush1.xpose.msra.mxu0 0.0
      %1420 = vmatprep.subr.mxu0 0.0
      %1421 = vmatpush1.xpose.msra.mxu0 0.0
      %1422 = vmatprep.subr.mxu0 0.0
      %1423 = vmatpush1.xpose.msra.mxu0 0.0
      %1424 = vmatprep.subr.mxu0 0.0
      %1425 = vmatpush1.xpose.msra.mxu0 0.0
      %1426 = vmatprep.subr.mxu0 0.0
      %1427 = vmatpush1.xpose.msra.mxu0 0.0
      %1428 = vmatprep.subr.mxu0 0.0
      %1429 = vmatpush1.xpose.msra.mxu0 0.0
      %1430 = vmatprep.subr.mxu0 0.0
      %1431 = vmatpush1.xpose.msra.mxu0 %v1400
      %1432 = vmatprep.subr.mxu0 0.0
      %1433 = vmatpush1.xpose.msra.mxu0 %v1398
      %1434 = vmatprep.subr.mxu0 0.0
      %1435 = vmatpush2.xpose.msra.mxu0 0.0
      %1436 = vmatprep.subr.mxu0 0.0
      %1437 = vmatpush2.xpose.msra.mxu0 0.0
      %1438 = vmatprep.subr.mxu0 0.0
      %1439 = vmatpush2.xpose.msra.mxu0 0.0
      %1440 = vmatprep.subr.mxu0 0.0
      %1441 = vmatpush2.xpose.msra.mxu0 0.0
      %1442 = vmatprep.subr.mxu0 0.0
      %1443 = vmatpush2.xpose.msra.mxu0 0.0
      %1444 = vmatprep.subr.mxu0 0.0
      %1445 = vmatpush2.xpose.msra.mxu0 0.0
      %1446 = vmatprep.subr.mxu0 0.0
      %1447 = vmatpush2.xpose.msra.mxu0 0.0
      %1448 = vmatprep.subr.mxu0 0.0
      %1449 = vmatpush2.xpose.msra.mxu0 0.0
      %1450 = vmatprep.subr.mxu0 0.0
      %1451 = vmatpush2.xpose.msra.mxu0 0.0
      %1452 = vmatprep.subr.mxu0 0.0
      %1453 = vmatpush2.xpose.msra.mxu0 0.0
      %1454 = vmatprep.subr.mxu0 0.0
      %1455 = vmatpush2.xpose.msra.mxu0 0.0
      %1456 = vmatprep.subr.mxu0 0.0
      %1457 = vmatpush2.xpose.msra.mxu0 0.0
      %1458 = vmatprep.subr.mxu0 0.0
      %1459 = vmatpush2.xpose.msra.mxu0 0.0
      %1460 = vmatprep.subr.mxu0 0.0
      %1461 = vmatpush2.xpose.msra.mxu0 0.0
      %1462 = vmatprep.subr.mxu0 0.0
      %1463 = vmatpush2.xpose.msra.mxu0 0.0
      %1464 = vmatprep.subr.mxu0 0.0
      %1465 = vmatpush2.xpose.msra.mxu0 0.0
      %1466 = vmatprep.mubr.f32.mxu0 0.0
      %1467 = vmatmul.mubr.f32.gmra.mxu0 %v1394
      %v1468 = vpop.f32.mrf.mxu0
      %v1469 = vadd.f32 0.0, %v1468
      %v1470 = vpop.f32.mrf.mxu0
      %1471 = vmatprep.mubr.f32.mxu0 0.0
      %1472 = vmatmul.mubr.f32.gmra.mxu0 %v1396
      %v1473 = vpop.f32.mrf.mxu0
      %v1474 = vadd.f32 0.0, %v1473
      %v1475 = vpop.f32.mrf.mxu0
      %1476 = vdwg.mxu0
      %v1477 = vmul.f32 %v1469, 0.35355338
      %v1478 = vmul.f32 %v1474, 0.35355338
      %v1479 = vadd.f32 %v1477, %v692
      %v1480 = vadd.f32 %v1478, %v693
      %v1481 = vsel %vm1051, %v1479, -inf
      %1482 = vmax.xlane.f32.xlu0 %v1481
      %v1483 = vpop.xlane.xlu0 %1482
      %v1484 = vsel %vm1055, %v1480, -inf
      %1485 = vmax.xlane.f32.xlu0 %v1484
      %v1486 = vpop.xlane.xlu0 %1485
      %v1487 = vsub.f32 %v1479, %v1483
      %v1488 = vsub.f32 %v1480, %v1486
      %v1489 = vmul.f32 %v1487, 1.442695
      %v1490 = vpow.pop %v1489
      %v1491 = vmul.f32 %v1488, 1.442695
      %v1492 = vpow.pop %v1491
      %v1493 = vsel %vm1051, %v1490, 0.0
      %1494 = vadd.xlane.f32.xlu0 %v1493
      %v1495 = vpop.xlane.xlu0 %1494
      %v1496 = vsel %vm1055, %v1492, 0.0
      %1497 = vadd.xlane.f32.xlu0 %v1496
      %v1498 = vpop.xlane.xlu0 %1497
      %v1499 = vrcp.pop %v1495
      %v1500 = vrcp.pop %v1498
      %v1501 = vmul.f32 %v1490, %v1499
      %v1502 = vmul.f32 %v1492, %v1500
      %s1503 = scalar_lea.vmem %s689, 32
      %1504 = vst.msk [vmem:[%s1503] sm:$0xff] %vm1051, %v1501
      %1505 = vst.msk [vmem:[%s1503 + $0x8] sm:$0x1] %vm1055, %v1502
      %1506 = vrot.lane.b32.xlu0 %v951, 112
      %v1507 = vpop.permute.xlu0 %1506
      %1508 = vrot.lane.b32.xlu0 %v956, 112
      %v1509 = vpop.permute.xlu0 %1508
      %v1512 = vsel %vm1051, %v1501, 0
      %v1515 = vsel %vm1051, %v1502, 0
      %v1517 = vsel %vm1083, %v1509, 0
      %1519 = vmatprep.subr.mxu0 0.0
      %1520 = vmatpush1.msra.mxu0 0.0
      %1521 = vmatprep.subr.mxu0 0.0
      %1522 = vmatpush1.msra.mxu0 0.0
      %1523 = vmatprep.subr.mxu0 0.0
      %1524 = vmatpush1.msra.mxu0 0.0
      %1525 = vmatprep.subr.mxu0 0.0
      %1526 = vmatpush1.msra.mxu0 0.0
      %1527 = vmatprep.subr.mxu0 0.0
      %1528 = vmatpush1.msra.mxu0 0.0
      %1529 = vmatprep.subr.mxu0 0.0
      %1530 = vmatpush1.msra.mxu0 0.0
      %1531 = vmatprep.subr.mxu0 0.0
      %1532 = vmatpush1.msra.mxu0 0.0
      %1533 = vmatprep.subr.mxu0 0.0
      %1534 = vmatpush1.msra.mxu0 0.0
      %1535 = vmatprep.subr.mxu0 0.0
      %1536 = vmatpush1.msra.mxu0 0.0
      %1537 = vmatprep.subr.mxu0 0.0
      %1538 = vmatpush1.msra.mxu0 0.0
      %1539 = vmatprep.subr.mxu0 0.0
      %1540 = vmatpush1.msra.mxu0 0.0
      %1541 = vmatprep.subr.mxu0 0.0
      %1542 = vmatpush1.msra.mxu0 0.0
      %1543 = vmatprep.subr.mxu0 0.0
      %1544 = vmatpush1.msra.mxu0 0.0
      %1545 = vmatprep.subr.mxu0 0.0
      %1546 = vmatpush1.msra.mxu0 0.0
      %1547 = vmatprep.subr.mxu0 0.0
      %1548 = vmatpush1.msra.mxu0 %v1517
      %1549 = vmatprep.subr.mxu0 0.0
      %1550 = vmatpush1.msra.mxu0 %v1507
      %1551 = vmatprep.subr.mxu0 0.0
      %1552 = vmatpush2.msra.mxu0 0.0
      %1553 = vmatprep.subr.mxu0 0.0
      %1554 = vmatpush2.msra.mxu0 0.0
      %1555 = vmatprep.subr.mxu0 0.0
      %1556 = vmatpush2.msra.mxu0 0.0
      %1557 = vmatprep.subr.mxu0 0.0
      %1558 = vmatpush2.msra.mxu0 0.0
      %1559 = vmatprep.subr.mxu0 0.0
      %1560 = vmatpush2.msra.mxu0 0.0
      %1561 = vmatprep.subr.mxu0 0.0
      %1562 = vmatpush2.msra.mxu0 0.0
      %1563 = vmatprep.subr.mxu0 0.0
      %1564 = vmatpush2.msra.mxu0 0.0
      %1565 = vmatprep.subr.mxu0 0.0
      %1566 = vmatpush2.msra.mxu0 0.0
      %1567 = vmatprep.subr.mxu0 0.0
      %1568 = vmatpush2.msra.mxu0 0.0
      %1569 = vmatprep.subr.mxu0 0.0
      %1570 = vmatpush2.msra.mxu0 0.0
      %1571 = vmatprep.subr.mxu0 0.0
      %1572 = vmatpush2.msra.mxu0 0.0
      %1573 = vmatprep.subr.mxu0 0.0
      %1574 = vmatpush2.msra.mxu0 0.0
      %1575 = vmatprep.subr.mxu0 0.0
      %1576 = vmatpush2.msra.mxu0 0.0
      %1577 = vmatprep.subr.mxu0 0.0
      %1578 = vmatpush2.msra.mxu0 0.0
      %1579 = vmatprep.subr.mxu0 0.0
      %1580 = vmatpush2.msra.mxu0 0.0
      %1581 = vmatprep.subr.mxu0 0.0
      %1582 = vmatpush2.msra.mxu0 0.0
      %1583 = vmatprep.mubr.f32.mxu0 0.0
      %1584 = vmatmul.mubr.f32.gmra.mxu0 %v1512
      %v1585 = vpop.f32.mrf.mxu0
      %v1586 = vadd.f32 0.0, %v1585
      %v1587 = vpop.f32.mrf.mxu0
      %1588 = vmatprep.mubr.f32.mxu0 0.0
      %1589 = vmatmul.mubr.f32.gmra.mxu0 %v1515
      %v1590 = vpop.f32.mrf.mxu0
      %v1591 = vadd.f32 0.0, %v1590
      %v1592 = vpop.f32.mrf.mxu0
      %1593 = vdwg.mxu0
      %1596 = vrot.lane.b32.xlu0 %v1586, 16
      %v1597 = vpop.permute.xlu0 %1596
      %1598 = vrot.lane.b32.xlu0 %v1591, 16
      %v1599 = vpop.permute.xlu0 %1598
      %vm1602 = vcmask 195712
      %1603 = vst.msk [vmem:[#allocation2] sm:$0xff] %vm1602, %v1597
      %vm1604 = vcmask 188544
      %1605 = vst.msk [vmem:[#allocation2 + $0x8] sm:$0x1] %vm1604, %v1599
      %1606 = vrot.lane.b32.xlu0 %v779, 104
      %v1607 = vpop.permute.xlu0 %1606
      %1608 = vrot.lane.b32.xlu0 %v784, 104
      %v1609 = vpop.permute.xlu0 %1608
      %1610 = vrot.lane.b32.xlu0 %v865, 104
      %v1611 = vpop.permute.xlu0 %1610
      %1612 = vrot.lane.b32.xlu0 %v870, 104
      %v1613 = vpop.permute.xlu0 %1612
      %v1614 = vsel %vm959, %v1607, 0
      %v1616 = vsel %vm959, %v1609, 0
      %v1618 = vsel %vm959, %v1611, 0
      %v1620 = vsel %vm959, %v1613, 0
      %1622 = vmatprep.subr.mxu0 0.0
      %1623 = vmatpush1.xpose.msra.mxu0 0.0
      %1624 = vmatprep.subr.mxu0 0.0
      %1625 = vmatpush1.xpose.msra.mxu0 0.0
      %1626 = vmatprep.subr.mxu0 0.0
      %1627 = vmatpush1.xpose.msra.mxu0 0.0
      %1628 = vmatprep.subr.mxu0 0.0
      %1629 = vmatpush1.xpose.msra.mxu0 0.0
      %1630 = vmatprep.subr.mxu0 0.0
      %1631 = vmatpush1.xpose.msra.mxu0 0.0
      %1632 = vmatprep.subr.mxu0 0.0
      %1633 = vmatpush1.xpose.msra.mxu0 0.0
      %1634 = vmatprep.subr.mxu0 0.0
      %1635 = vmatpush1.xpose.msra.mxu0 0.0
      %1636 = vmatprep.subr.mxu0 0.0
      %1637 = vmatpush1.xpose.msra.mxu0 0.0
      %1638 = vmatprep.subr.mxu0 0.0
      %1639 = vmatpush1.xpose.msra.mxu0 0.0
      %1640 = vmatprep.subr.mxu0 0.0
      %1641 = vmatpush1.xpose.msra.mxu0 0.0
      %1642 = vmatprep.subr.mxu0 0.0
      %1643 = vmatpush1.xpose.msra.mxu0 0.0
      %1644 = vmatprep.subr.mxu0 0.0
      %1645 = vmatpush1.xpose.msra.mxu0 0.0
      %1646 = vmatprep.subr.mxu0 0.0
      %1647 = vmatpush1.xpose.msra.mxu0 0.0
      %1648 = vmatprep.subr.mxu0 0.0
      %1649 = vmatpush1.xpose.msra.mxu0 0.0
      %1650 = vmatprep.subr.mxu0 0.0
      %1651 = vmatpush1.xpose.msra.mxu0 %v1620
      %1652 = vmatprep.subr.mxu0 0.0
      %1653 = vmatpush1.xpose.msra.mxu0 %v1618
      %1654 = vmatprep.subr.mxu0 0.0
      %1655 = vmatpush2.xpose.msra.mxu0 0.0
      %1656 = vmatprep.subr.mxu0 0.0
      %1657 = vmatpush2.xpose.msra.mxu0 0.0
      %1658 = vmatprep.subr.mxu0 0.0
      %1659 = vmatpush2.xpose.msra.mxu0 0.0
      %1660 = vmatprep.subr.mxu0 0.0
      %1661 = vmatpush2.xpose.msra.mxu0 0.0
      %1662 = vmatprep.subr.mxu0 0.0
      %1663 = vmatpush2.xpose.msra.mxu0 0.0
      %1664 = vmatprep.subr.mxu0 0.0
      %1665 = vmatpush2.xpose.msra.mxu0 0.0
      %1666 = vmatprep.subr.mxu0 0.0
      %1667 = vmatpush2.xpose.msra.mxu0 0.0
      %1668 = vmatprep.subr.mxu0 0.0
      %1669 = vmatpush2.xpose.msra.mxu0 0.0
      %1670 = vmatprep.subr.mxu0 0.0
      %1671 = vmatpush2.xpose.msra.mxu0 0.0
      %1672 = vmatprep.subr.mxu0 0.0
      %1673 = vmatpush2.xpose.msra.mxu0 0.0
      %1674 = vmatprep.subr.mxu0 0.0
      %1675 = vmatpush2.xpose.msra.mxu0 0.0
      %1676 = vmatprep.subr.mxu0 0.0
      %1677 = vmatpush2.xpose.msra.mxu0 0.0
      %1678 = vmatprep.subr.mxu0 0.0
      %1679 = vmatpush2.xpose.msra.mxu0 0.0
      %1680 = vmatprep.subr.mxu0 0.0
      %1681 = vmatpush2.xpose.msra.mxu0 0.0
      %1682 = vmatprep.subr.mxu0 0.0
      %1683 = vmatpush2.xpose.msra.mxu0 0.0
      %1684 = vmatprep.subr.mxu0 0.0
      %1685 = vmatpush2.xpose.msra.mxu0 0.0
      %1686 = vmatprep.mubr.f32.mxu0 0.0
      %1687 = vmatmul.mubr.f32.gmra.mxu0 %v1614
      %v1688 = vpop.f32.mrf.mxu0
      %v1689 = vadd.f32 0.0, %v1688
      %v1690 = vpop.f32.mrf.mxu0
      %1691 = vmatprep.mubr.f32.mxu0 0.0
      %1692 = vmatmul.mubr.f32.gmra.mxu0 %v1616
      %v1693 = vpop.f32.mrf.mxu0
      %v1694 = vadd.f32 0.0, %v1693
      %v1695 = vpop.f32.mrf.mxu0
      %1696 = vdwg.mxu0
      %v1697 = vmul.f32 %v1689, 0.35355338
      %v1698 = vmul.f32 %v1694, 0.35355338
      %v1699 = vadd.f32 %v1697, %v692
      %v1700 = vadd.f32 %v1698, %v693
      %v1701 = vsel %vm1051, %v1699, -inf
      %1702 = vmax.xlane.f32.xlu0 %v1701
      %v1703 = vpop.xlane.xlu0 %1702
      %v1704 = vsel %vm1055, %v1700, -inf
      %1705 = vmax.xlane.f32.xlu0 %v1704
      %v1706 = vpop.xlane.xlu0 %1705
      %v1707 = vsub.f32 %v1699, %v1703
      %v1708 = vsub.f32 %v1700, %v1706
      %v1709 = vmul.f32 %v1707, 1.442695
      %v1710 = vpow.pop %v1709
      %v1711 = vmul.f32 %v1708, 1.442695
      %v1712 = vpow.pop %v1711
      %v1713 = vsel %vm1051, %v1710, 0.0
      %1714 = vadd.xlane.f32.xlu0 %v1713
      %v1715 = vpop.xlane.xlu0 %1714
      %v1716 = vsel %vm1055, %v1712, 0.0
      %1717 = vadd.xlane.f32.xlu0 %v1716
      %v1718 = vpop.xlane.xlu0 %1717
      %v1719 = vrcp.pop %v1715
      %v1720 = vrcp.pop %v1718
      %v1721 = vmul.f32 %v1710, %v1719
      %v1722 = vmul.f32 %v1712, %v1720
      %s1723 = scalar_lea.vmem %s689, 48
      %1724 = vst.msk [vmem:[%s1723] sm:$0xff] %vm1051, %v1721
      %1725 = vst.msk [vmem:[%s1723 + $0x8] sm:$0x1] %vm1055, %v1722
      %1726 = vrot.lane.b32.xlu0 %v951, 104
      %v1727 = vpop.permute.xlu0 %1726
      %1728 = vrot.lane.b32.xlu0 %v956, 104
      %v1729 = vpop.permute.xlu0 %1728
      %v1732 = vsel %vm1051, %v1721, 0
      %v1735 = vsel %vm1051, %v1722, 0
      %v1737 = vsel %vm1083, %v1729, 0
      %1739 = vmatprep.subr.mxu0 0.0
      %1740 = vmatpush1.msra.mxu0 0.0
      %1741 = vmatprep.subr.mxu0 0.0
      %1742 = vmatpush1.msra.mxu0 0.0
      %1743 = vmatprep.subr.mxu0 0.0
      %1744 = vmatpush1.msra.mxu0 0.0
      %1745 = vmatprep.subr.mxu0 0.0
      %1746 = vmatpush1.msra.mxu0 0.0
      %1747 = vmatprep.subr.mxu0 0.0
      %1748 = vmatpush1.msra.mxu0 0.0
      %1749 = vmatprep.subr.mxu0 0.0
      %1750 = vmatpush1.msra.mxu0 0.0
      %1751 = vmatprep.subr.mxu0 0.0
      %1752 = vmatpush1.msra.mxu0 0.0
      %1753 = vmatprep.subr.mxu0 0.0
      %1754 = vmatpush1.msra.mxu0 0.0
      %1755 = vmatprep.subr.mxu0 0.0
      %1756 = vmatpush1.msra.mxu0 0.0
      %1757 = vmatprep.subr.mxu0 0.0
      %1758 = vmatpush1.msra.mxu0 0.0
      %1759 = vmatprep.subr.mxu0 0.0
      %1760 = vmatpush1.msra.mxu0 0.0
      %1761 = vmatprep.subr.mxu0 0.0
      %1762 = vmatpush1.msra.mxu0 0.0
      %1763 = vmatprep.subr.mxu0 0.0
      %1764 = vmatpush1.msra.mxu0 0.0
      %1765 = vmatprep.subr.mxu0 0.0
      %1766 = vmatpush1.msra.mxu0 0.0
      %1767 = vmatprep.subr.mxu0 0.0
      %1768 = vmatpush1.msra.mxu0 %v1737
      %1769 = vmatprep.subr.mxu0 0.0
      %1770 = vmatpush1.msra.mxu0 %v1727
      %1771 = vmatprep.subr.mxu0 0.0
      %1772 = vmatpush2.msra.mxu0 0.0
      %1773 = vmatprep.subr.mxu0 0.0
      %1774 = vmatpush2.msra.mxu0 0.0
      %1775 = vmatprep.subr.mxu0 0.0
      %1776 = vmatpush2.msra.mxu0 0.0
      %1777 = vmatprep.subr.mxu0 0.0
      %1778 = vmatpush2.msra.mxu0 0.0
      %1779 = vmatprep.subr.mxu0 0.0
      %1780 = vmatpush2.msra.mxu0 0.0
      %1781 = vmatprep.subr.mxu0 0.0
      %1782 = vmatpush2.msra.mxu0 0.0
      %1783 = vmatprep.subr.mxu0 0.0
      %1784 = vmatpush2.msra.mxu0 0.0
      %1785 = vmatprep.subr.mxu0 0.0
      %1786 = vmatpush2.msra.mxu0 0.0
      %1787 = vmatprep.subr.mxu0 0.0
      %1788 = vmatpush2.msra.mxu0 0.0
      %1789 = vmatprep.subr.mxu0 0.0
      %1790 = vmatpush2.msra.mxu0 0.0
      %1791 = vmatprep.subr.mxu0 0.0
      %1792 = vmatpush2.msra.mxu0 0.0
      %1793 = vmatprep.subr.mxu0 0.0
      %1794 = vmatpush2.msra.mxu0 0.0
      %1795 = vmatprep.subr.mxu0 0.0
      %1796 = vmatpush2.msra.mxu0 0.0
      %1797 = vmatprep.subr.mxu0 0.0
      %1798 = vmatpush2.msra.mxu0 0.0
      %1799 = vmatprep.subr.mxu0 0.0
      %1800 = vmatpush2.msra.mxu0 0.0
      %1801 = vmatprep.subr.mxu0 0.0
      %1802 = vmatpush2.msra.mxu0 0.0
      %1803 = vmatprep.mubr.f32.mxu0 0.0
      %1804 = vmatmul.mubr.f32.gmra.mxu0 %v1732
      %v1805 = vpop.f32.mrf.mxu0
      %v1806 = vadd.f32 0.0, %v1805
      %v1807 = vpop.f32.mrf.mxu0
      %1808 = vmatprep.mubr.f32.mxu0 0.0
      %1809 = vmatmul.mubr.f32.gmra.mxu0 %v1735
      %v1810 = vpop.f32.mrf.mxu0
      %v1811 = vadd.f32 0.0, %v1810
      %v1812 = vpop.f32.mrf.mxu0
      %1813 = vdwg.mxu0
      %1816 = vrot.lane.b32.xlu0 %v1806, 24
      %v1817 = vpop.permute.xlu0 %1816
      %1818 = vrot.lane.b32.xlu0 %v1811, 24
      %v1819 = vpop.permute.xlu0 %1818
      %vm1822 = vcmask 261312
      %1823 = vst.msk [vmem:[#allocation2] sm:$0xff] %vm1822, %v1817
      %vm1824 = vcmask 254144
      %1825 = vst.msk [vmem:[#allocation2 + $0x8] sm:$0x1] %vm1824, %v1819
      %v1826 = vld [vmem:[#allocation2] sm:$0xff]
      %v1827 = vld [vmem:[#allocation2 + $0x8] sm:$0x1]
      %v1828 = vld [vmem:[%s8] sm:$0xff]
      %v1829 = vld [vmem:[%s8 + $0x8] sm:$0xff]
      %v1830 = vld [vmem:[%s8 + $0x10] sm:$0xff]
      %v1831 = vld [vmem:[%s8 + $0x18] sm:$0xff]
      %v1832 = vld [vmem:[%s9] sm:$0x1]
      %v1834 = vlaneseq
      %v1835 = vshrl.u32 %v1834, 7
      %v1836 = vsub.s32 0, %v1835
      %v1837 = vrot.slane %v1832, %v1836
      %v1840 = vsel %vm705, %v1826, 0
      %v1843 = vsel %vm705, %v1827, 0
      %1845 = vmatprep.subr.mxu0 0.0
      %1846 = vmatpush1.msra.mxu0 0.0
      %1847 = vmatprep.subr.mxu0 0.0
      %1848 = vmatpush1.msra.mxu0 0.0
      %1849 = vmatprep.subr.mxu0 0.0
      %1850 = vmatpush1.msra.mxu0 0.0
      %1851 = vmatprep.subr.mxu0 0.0
      %1852 = vmatpush1.msra.mxu0 0.0
      %1853 = vmatprep.subr.mxu0 0.0
      %1854 = vmatpush1.msra.mxu0 0.0
      %1855 = vmatprep.subr.mxu0 0.0
      %1856 = vmatpush1.msra.mxu0 0.0
      %1857 = vmatprep.subr.mxu0 0.0
      %1858 = vmatpush1.msra.mxu0 0.0
      %1859 = vmatprep.subr.mxu0 0.0
      %1860 = vmatpush1.msra.mxu0 0.0
      %1861 = vmatprep.subr.mxu0 0.0
      %1862 = vmatpush1.msra.mxu0 0.0
      %1863 = vmatprep.subr.mxu0 0.0
      %1864 = vmatpush1.msra.mxu0 0.0
      %1865 = vmatprep.subr.mxu0 0.0
      %1866 = vmatpush1.msra.mxu0 0.0
      %1867 = vmatprep.subr.mxu0 0.0
      %1868 = vmatpush1.msra.mxu0 0.0
      %1869 = vmatprep.subr.mxu0 0.0
      %1870 = vmatpush1.msra.mxu0 %v1831
      %1871 = vmatprep.subr.mxu0 0.0
      %1872 = vmatpush1.msra.mxu0 %v1830
      %1873 = vmatprep.subr.mxu0 0.0
      %1874 = vmatpush1.msra.mxu0 %v1829
      %1875 = vmatprep.subr.mxu0 0.0
      %1876 = vmatpush1.msra.mxu0 %v1828
      %1877 = vmatprep.subr.mxu0 0.0
      %1878 = vmatpush2.msra.mxu0 0.0
      %1879 = vmatprep.subr.mxu0 0.0
      %1880 = vmatpush2.msra.mxu0 0.0
      %1881 = vmatprep.subr.mxu0 0.0
      %1882 = vmatpush2.msra.mxu0 0.0
      %1883 = vmatprep.subr.mxu0 0.0
      %1884 = vmatpush2.msra.mxu0 0.0
      %1885 = vmatprep.subr.mxu0 0.0
      %1886 = vmatpush2.msra.mxu0 0.0
      %1887 = vmatprep.subr.mxu0 0.0
      %1888 = vmatpush2.msra.mxu0 0.0
      %1889 = vmatprep.subr.mxu0 0.0
      %1890 = vmatpush2.msra.mxu0 0.0
      %1891 = vmatprep.subr.mxu0 0.0
      %1892 = vmatpush2.msra.mxu0 0.0
      %1893 = vmatprep.subr.mxu0 0.0
      %1894 = vmatpush2.msra.mxu0 0.0
      %1895 = vmatprep.subr.mxu0 0.0
      %1896 = vmatpush2.msra.mxu0 0.0
      %1897 = vmatprep.subr.mxu0 0.0
      %1898 = vmatpush2.msra.mxu0 0.0
      %1899 = vmatprep.subr.mxu0 0.0
      %1900 = vmatpush2.msra.mxu0 0.0
      %1901 = vmatprep.subr.mxu0 0.0
      %1902 = vmatpush2.msra.mxu0 0.0
      %1903 = vmatprep.subr.mxu0 0.0
      %1904 = vmatpush2.msra.mxu0 0.0
      %1905 = vmatprep.subr.mxu0 0.0
      %1906 = vmatpush2.msra.mxu0 0.0
      %1907 = vmatprep.subr.mxu0 0.0
      %1908 = vmatpush2.msra.mxu0 0.0
      %1909 = vmatprep.mubr.f32.mxu0 0.0
      %1910 = vmatmul.mubr.f32.gmra.mxu0 %v1840
      %v1911 = vpop.f32.mrf.mxu0
      %v1912 = vadd.f32 %v1837, %v1911
      %v1913 = vpop.f32.mrf.mxu0
      %1914 = vmatprep.mubr.f32.mxu0 0.0
      %1915 = vmatmul.mubr.f32.gmra.mxu0 %v1843
      %v1916 = vpop.f32.mrf.mxu0
      %v1917 = vadd.f32 %v1837, %v1916
      %v1918 = vpop.f32.mrf.mxu0
      %1919 = vdwg.mxu0
      %v1920 = vxor.u32 %v1912, 2147483648
      %v1921 = vxor.u32 %v1917, 2147483648
      %v1922 = vmul.f32 %v1920, 1.442695
      %v1923 = vpow.pop %v1922
      %v1924 = vmul.f32 %v1921, 1.442695
      %v1925 = vpow.pop %v1924
      %v1926 = vadd.f32 %v1923, 1.0
      %v1927 = vadd.f32 %v1925, 1.0
      %v1928 = vrcp.pop %v1926
      %v1929 = vmul.f32 1.0, %v1928
      %v1930 = vrcp.pop %v1927
      %v1931 = vmul.f32 1.0, %v1930
      %v1932 = vmul.f32 %v1912, %v1929
      %v1933 = vmul.f32 %v1917, %v1931
      %v1934 = vld [vmem:[%s10] sm:$0xff]
      %v1935 = vld [vmem:[%s10 + $0x8] sm:$0xff]
      %v1936 = vld [vmem:[%s10 + $0x10] sm:$0xff]
      %v1937 = vld [vmem:[%s10 + $0x18] sm:$0xff]
      %v1938 = vld [vmem:[%s11] sm:$0x1]
      %v1940 = vlaneseq
      %v1941 = vshrl.u32 %v1940, 7
      %v1942 = vsub.s32 0, %v1941
      %v1943 = vrot.slane %v1938, %v1942
      %v1946 = vsel %vm705, %v1932, 0
      %v1949 = vsel %vm705, %v1933, 0
      %1951 = vmatprep.subr.mxu0 0.0
      %1952 = vmatpush1.msra.mxu0 0.0
      %1953 = vmatprep.subr.mxu0 0.0
      %1954 = vmatpush1.msra.mxu0 0.0
      %1955 = vmatprep.subr.mxu0 0.0
      %1956 = vmatpush1.msra.mxu0 0.0
      %1957 = vmatprep.subr.mxu0 0.0
      %1958 = vmatpush1.msra.mxu0 0.0
      %1959 = vmatprep.subr.mxu0 0.0
      %1960 = vmatpush1.msra.mxu0 0.0
      %1961 = vmatprep.subr.mxu0 0.0
      %1962 = vmatpush1.msra.mxu0 0.0
      %1963 = vmatprep.subr.mxu0 0.0
      %1964 = vmatpush1.msra.mxu0 0.0
      %1965 = vmatprep.subr.mxu0 0.0
      %1966 = vmatpush1.msra.mxu0 0.0
      %1967 = vmatprep.subr.mxu0 0.0
      %1968 = vmatpush1.msra.mxu0 0.0
      %1969 = vmatprep.subr.mxu0 0.0
      %1970 = vmatpush1.msra.mxu0 0.0
      %1971 = vmatprep.subr.mxu0 0.0
      %1972 = vmatpush1.msra.mxu0 0.0
      %1973 = vmatprep.subr.mxu0 0.0
      %1974 = vmatpush1.msra.mxu0 0.0
      %1975 = vmatprep.subr.mxu0 0.0
      %1976 = vmatpush1.msra.mxu0 %v1937
      %1977 = vmatprep.subr.mxu0 0.0
      %1978 = vmatpush1.msra.mxu0 %v1936
      %1979 = vmatprep.subr.mxu0 0.0
      %1980 = vmatpush1.msra.mxu0 %v1935
      %1981 = vmatprep.subr.mxu0 0.0
      %1982 = vmatpush1.msra.mxu0 %v1934
      %1983 = vmatprep.subr.mxu0 0.0
      %1984 = vmatpush2.msra.mxu0 0.0
      %1985 = vmatprep.subr.mxu0 0.0
      %1986 = vmatpush2.msra.mxu0 0.0
      %1987 = vmatprep.subr.mxu0 0.0
      %1988 = vmatpush2.msra.mxu0 0.0
      %1989 = vmatprep.subr.mxu0 0.0
      %1990 = vmatpush2.msra.mxu0 0.0
      %1991 = vmatprep.subr.mxu0 0.0
      %1992 = vmatpush2.msra.mxu0 0.0
      %1993 = vmatprep.subr.mxu0 0.0
      %1994 = vmatpush2.msra.mxu0 0.0
      %1995 = vmatprep.subr.mxu0 0.0
      %1996 = vmatpush2.msra.mxu0 0.0
      %1997 = vmatprep.subr.mxu0 0.0
      %1998 = vmatpush2.msra.mxu0 0.0
      %1999 = vmatprep.subr.mxu0 0.0
      %2000 = vmatpush2.msra.mxu0 0.0
      %2001 = vmatprep.subr.mxu0 0.0
      %2002 = vmatpush2.msra.mxu0 0.0
      %2003 = vmatprep.subr.mxu0 0.0
      %2004 = vmatpush2.msra.mxu0 0.0
      %2005 = vmatprep.subr.mxu0 0.0
      %2006 = vmatpush2.msra.mxu0 0.0
      %2007 = vmatprep.subr.mxu0 0.0
      %2008 = vmatpush2.msra.mxu0 0.0
      %2009 = vmatprep.subr.mxu0 0.0
      %2010 = vmatpush2.msra.mxu0 0.0
      %2011 = vmatprep.subr.mxu0 0.0
      %2012 = vmatpush2.msra.mxu0 0.0
      %2013 = vmatprep.subr.mxu0 0.0
      %2014 = vmatpush2.msra.mxu0 0.0
      %2015 = vmatprep.mubr.f32.mxu0 0.0
      %2016 = vmatmul.mubr.f32.gmra.mxu0 %v1946
      %v2017 = vpop.f32.mrf.mxu0
      %v2018 = vadd.f32 %v1943, %v2017
      %v2019 = vpop.f32.mrf.mxu0
      %2020 = vmatprep.mubr.f32.mxu0 0.0
      %2021 = vmatmul.mubr.f32.gmra.mxu0 %v1949
      %v2022 = vpop.f32.mrf.mxu0
      %v2023 = vadd.f32 %v1943, %v2022
      %v2024 = vpop.f32.mrf.mxu0
      %2025 = vdwg.mxu0
      %v2026 = vadd.f32 %v2018, %v690
      %v2027 = vadd.f32 %v2023, %v691
      %v2028 = vsel %vm705, %v2026, 0.0
      %2029 = vadd.xlane.f32.xlu0 %v2028
      %v2030 = vpop.xlane.xlu0 %2029
      %vm2031 = vcmask 253952
      %v2032 = vsel %vm2031, %v2027, 0.0
      %2033 = vadd.xlane.f32.xlu0 %v2032
      %v2034 = vpop.xlane.xlu0 %2033
      %v2035 = vrcp.pop 32.0
      %v2036 = vmul.f32 %v2030, %v2035
      %v2037 = vmul.f32 %v2034, %v2035
      %v2038 = vsub.f32 %v2026, %v2036
      %v2039 = vsub.f32 %v2027, %v2037
      %v2040 = vmul.f32 %v2038, %v2038
      %v2041 = vmul.f32 %v2039, %v2039
      %v2042 = vsel %vm705, %v2040, 0.0
      %2043 = vadd.xlane.f32.xlu0 %v2042
      %v2044 = vpop.xlane.xlu0 %2043
      %v2045 = vsel %vm2031, %v2041, 0.0
      %2046 = vadd.xlane.f32.xlu0 %v2045
      %v2047 = vpop.xlane.xlu0 %2046
      %v2048 = vmul.f32 %v2044, %v2035
      %v2049 = vmul.f32 %v2047, %v2035
      %v2050 = vadd.f32 %v2048, 1e-06
      %v2051 = vadd.f32 %v2049, 1e-06
      %v2052 = vrsqrt.pop %v2050
      %v2053 = vrsqrt.pop %v2051
      %v2054 = vmul.f32 %v2038, %v2052
      %v2055 = vmul.f32 %v2039, %v2053
      %v2056 = vld [vmem:[%s12] sm:$0x1]
      %v2058 = vlaneseq
      %v2059 = vshrl.u32 %v2058, 7
      %v2060 = vsub.s32 0, %v2059
      %v2061 = vrot.slane %v2056, %v2060
      %v2063 = vmul.f32 %v2054, %v2061
      %v2064 = vmul.f32 %v2055, %v2061
      %v2065 = vld [vmem:[%s13] sm:$0x1]
      %v2067 = vlaneseq
      %v2068 = vshrl.u32 %v2067, 7
      %v2069 = vsub.s32 0, %v2068
      %v2070 = vrot.slane %v2065, %v2069
      %v2072 = vadd.f32 %v2063, %v2070
      %v2073 = vadd.f32 %v2064, %v2070
      %v2074 = vld [vmem:[%s14] sm:$0xff]
      %v2075 = vld [vmem:[%s14 + $0x8] sm:$0xff]
      %v2076 = vld [vmem:[%s14 + $0x10] sm:$0xff]
      %v2077 = vld [vmem:[%s14 + $0x18] sm:$0xff]
      %v2078 = vld [vmem:[%s15] sm:$0x1]
      %v2080 = vlaneseq
      %v2081 = vshrl.u32 %v2080, 7
      %v2082 = vsub.s32 0, %v2081
      %v2083 = vrot.slane %v2078, %v2082
      %v2086 = vsel %vm705, %v2072, 0
      %v2089 = vsel %vm705, %v2073, 0
      %2091 = vmatprep.subr.mxu0 0.0
      %2092 = vmatpush1.msra.mxu0 0.0
      %2093 = vmatprep.subr.mxu0 0.0
      %2094 = vmatpush1.msra.mxu0 0.0
      %2095 = vmatprep.subr.mxu0 0.0
      %2096 = vmatpush1.msra.mxu0 0.0
      %2097 = vmatprep.subr.mxu0 0.0
      %2098 = vmatpush1.msra.mxu0 0.0
      %2099 = vmatprep.subr.mxu0 0.0
      %2100 = vmatpush1.msra.mxu0 0.0
      %2101 = vmatprep.subr.mxu0 0.0
      %2102 = vmatpush1.msra.mxu0 0.0
      %2103 = vmatprep.subr.mxu0 0.0
      %2104 = vmatpush1.msra.mxu0 0.0
      %2105 = vmatprep.subr.mxu0 0.0
      %2106 = vmatpush1.msra.mxu0 0.0
      %2107 = vmatprep.subr.mxu0 0.0
      %2108 = vmatpush1.msra.mxu0 0.0
      %2109 = vmatprep.subr.mxu0 0.0
      %2110 = vmatpush1.msra.mxu0 0.0
      %2111 = vmatprep.subr.mxu0 0.0
      %2112 = vmatpush1.msra.mxu0 0.0
      %2113 = vmatprep.subr.mxu0 0.0
      %2114 = vmatpush1.msra.mxu0 0.0
      %2115 = vmatprep.subr.mxu0 0.0
      %2116 = vmatpush1.msra.mxu0 %v2077
      %2117 = vmatprep.subr.mxu0 0.0
      %2118 = vmatpush1.msra.mxu0 %v2076
      %2119 = vmatprep.subr.mxu0 0.0
      %2120 = vmatpush1.msra.mxu0 %v2075
      %2121 = vmatprep.subr.mxu0 0.0
      %2122 = vmatpush1.msra.mxu0 %v2074
      %2123 = vmatprep.subr.mxu0 0.0
      %2124 = vmatpush2.msra.mxu0 0.0
      %2125 = vmatprep.subr.mxu0 0.0
      %2126 = vmatpush2.msra.mxu0 0.0
      %2127 = vmatprep.subr.mxu0 0.0
      %2128 = vmatpush2.msra.mxu0 0.0
      %2129 = vmatprep.subr.mxu0 0.0
      %2130 = vmatpush2.msra.mxu0 0.0
      %2131 = vmatprep.subr.mxu0 0.0
      %2132 = vmatpush2.msra.mxu0 0.0
      %2133 = vmatprep.subr.mxu0 0.0
      %2134 = vmatpush2.msra.mxu0 0.0
      %2135 = vmatprep.subr.mxu0 0.0
      %2136 = vmatpush2.msra.mxu0 0.0
      %2137 = vmatprep.subr.mxu0 0.0
      %2138 = vmatpush2.msra.mxu0 0.0
      %2139 = vmatprep.subr.mxu0 0.0
      %2140 = vmatpush2.msra.mxu0 0.0
      %2141 = vmatprep.subr.mxu0 0.0
      %2142 = vmatpush2.msra.mxu0 0.0
      %2143 = vmatprep.subr.mxu0 0.0
      %2144 = vmatpush2.msra.mxu0 0.0
      %2145 = vmatprep.subr.mxu0 0.0
      %2146 = vmatpush2.msra.mxu0 0.0
      %2147 = vmatprep.subr.mxu0 0.0
      %2148 = vmatpush2.msra.mxu0 0.0
      %2149 = vmatprep.subr.mxu0 0.0
      %2150 = vmatpush2.msra.mxu0 0.0
      %2151 = vmatprep.subr.mxu0 0.0
      %2152 = vmatpush2.msra.mxu0 0.0
      %2153 = vmatprep.subr.mxu0 0.0
      %2154 = vmatpush2.msra.mxu0 0.0
      %2155 = vmatprep.mubr.f32.mxu0 0.0
      %2156 = vmatmul.mubr.f32.gmra.mxu0 %v2086
      %v2157 = vpop.f32.mrf.mxu0
      %v2158 = vadd.f32 %v2083, %v2157
      %v2159 = vpop.f32.mrf.mxu0
      %2160 = vmatprep.mubr.f32.mxu0 0.0
      %2161 = vmatmul.mubr.f32.gmra.mxu0 %v2089
      %v2162 = vpop.f32.mrf.mxu0
      %v2163 = vadd.f32 %v2083, %v2162
      %v2164 = vpop.f32.mrf.mxu0
      %2165 = vdwg.mxu0
      %v2166 = vmul.f32 %v2158, %v2158
      %v2167 = vmul.f32 %v2163, %v2163
      %v2168 = vmul.f32 %v2158, %v2166
      %v2169 = vmul.f32 %v2163, %v2167
      %v2170 = vmul.f32 %v2168, 0.044715
      %v2171 = vmul.f32 %v2169, 0.044715
      %v2172 = vadd.f32 %v2158, %v2170
      %v2173 = vadd.f32 %v2163, %v2171
      %v2174 = vmul.f32 %v2172, 0.7978846
      %v2175 = vmul.f32 %v2173, 0.7978846
      %v2176 = vtanh.pop %v2174
      %v2177 = vtanh.pop %v2175
      %v2178 = vadd.f32 %v2176, 1.0
      %v2179 = vadd.f32 %v2177, 1.0
      %v2180 = vmul.f32 %v2178, 0.5
      %v2181 = vmul.f32 %v2179, 0.5
      %v2182 = vmul.f32 %v2158, %v2180
      %v2183 = vmul.f32 %v2163, %v2181
      %v2184 = vld [vmem:[%s16] sm:$0xff]
      %v2185 = vld [vmem:[%s16 + $0x8] sm:$0xff]
      %v2186 = vld [vmem:[%s16 + $0x10] sm:$0xff]
      %v2187 = vld [vmem:[%s16 + $0x18] sm:$0xff]
      %v2188 = vld [vmem:[%s16 + $0x20] sm:$0xff]
      %v2189 = vld [vmem:[%s16 + $0x28] sm:$0xff]
      %v2190 = vld [vmem:[%s16 + $0x30] sm:$0xff]
      %v2191 = vld [vmem:[%s16 + $0x38] sm:$0xff]
      %v2192 = vld [vmem:[%s17] sm:$0x1]
      %v2194 = vlaneseq
      %v2195 = vshrl.u32 %v2194, 7
      %v2196 = vsub.s32 0, %v2195
      %v2197 = vrot.slane %v2192, %v2196
      %vm2199 = vcmask 523264
      %v2201 = vsel %vm2199, %v2182, 0
      %v2204 = vsel %vm2199, %v2183, 0
      %2206 = vmatprep.subr.mxu0 0.0
      %2207 = vmatpush1.msra.mxu0 0.0
      %2208 = vmatprep.subr.mxu0 0.0
      %2209 = vmatpush1.msra.mxu0 0.0
      %2210 = vmatprep.subr.mxu0 0.0
      %2211 = vmatpush1.msra.mxu0 0.0
      %2212 = vmatprep.subr.mxu0 0.0
      %2213 = vmatpush1.msra.mxu0 0.0
      %2214 = vmatprep.subr.mxu0 0.0
      %2215 = vmatpush1.msra.mxu0 0.0
      %2216 = vmatprep.subr.mxu0 0.0
      %2217 = vmatpush1.msra.mxu0 0.0
      %2218 = vmatprep.subr.mxu0 0.0
      %2219 = vmatpush1.msra.mxu0 0.0
      %2220 = vmatprep.subr.mxu0 0.0
      %2221 = vmatpush1.msra.mxu0 0.0
      %2222 = vmatprep.subr.mxu0 0.0
      %2223 = vmatpush1.msra.mxu0 %v2191
      %2224 = vmatprep.subr.mxu0 0.0
      %2225 = vmatpush1.msra.mxu0 %v2190
      %2226 = vmatprep.subr.mxu0 0.0
      %2227 = vmatpush1.msra.mxu0 %v2189
      %2228 = vmatprep.subr.mxu0 0.0
      %2229 = vmatpush1.msra.mxu0 %v2188
      %2230 = vmatprep.subr.mxu0 0.0
      %2231 = vmatpush1.msra.mxu0 %v2187
      %2232 = vmatprep.subr.mxu0 0.0
      %2233 = vmatpush1.msra.mxu0 %v2186
      %2234 = vmatprep.subr.mxu0 0.0
      %2235 = vmatpush1.msra.mxu0 %v2185
      %2236 = vmatprep.subr.mxu0 0.0
      %2237 = vmatpush1.msra.mxu0 %v2184
      %2238 = vmatprep.subr.mxu0 0.0
      %2239 = vmatpush2.msra.mxu0 0.0
      %2240 = vmatprep.subr.mxu0 0.0
      %2241 = vmatpush2.msra.mxu0 0.0
      %2242 = vmatprep.subr.mxu0 0.0
      %2243 = vmatpush2.msra.mxu0 0.0
      %2244 = vmatprep.subr.mxu0 0.0
      %2245 = vmatpush2.msra.mxu0 0.0
      %2246 = vmatprep.subr.mxu0 0.0
      %2247 = vmatpush2.msra.mxu0 0.0
      %2248 = vmatprep.subr.mxu0 0.0
      %2249 = vmatpush2.msra.mxu0 0.0
      %2250 = vmatprep.subr.mxu0 0.0
      %2251 = vmatpush2.msra.mxu0 0.0
      %2252 = vmatprep.subr.mxu0 0.0
      %2253 = vmatpush2.msra.mxu0 0.0
      %2254 = vmatprep.subr.mxu0 0.0
      %2255 = vmatpush2.msra.mxu0 0.0
      %2256 = vmatprep.subr.mxu0 0.0
      %2257 = vmatpush2.msra.mxu0 0.0
      %2258 = vmatprep.subr.mxu0 0.0
      %2259 = vmatpush2.msra.mxu0 0.0
      %2260 = vmatprep.subr.mxu0 0.0
      %2261 = vmatpush2.msra.mxu0 0.0
      %2262 = vmatprep.subr.mxu0 0.0
      %2263 = vmatpush2.msra.mxu0 0.0
      %2264 = vmatprep.subr.mxu0 0.0
      %2265 = vmatpush2.msra.mxu0 0.0
      %2266 = vmatprep.subr.mxu0 0.0
      %2267 = vmatpush2.msra.mxu0 0.0
      %2268 = vmatprep.subr.mxu0 0.0
      %2269 = vmatpush2.msra.mxu0 0.0
      %2270 = vmatprep.mubr.f32.mxu0 0.0
      %2271 = vmatmul.mubr.f32.gmra.mxu0 %v2201
      %v2272 = vpop.f32.mrf.mxu0
      %v2273 = vadd.f32 %v2197, %v2272
      %v2274 = vpop.f32.mrf.mxu0
      %2275 = vmatprep.mubr.f32.mxu0 0.0
      %2276 = vmatmul.mubr.f32.gmra.mxu0 %v2204
      %v2277 = vpop.f32.mrf.mxu0
      %v2278 = vadd.f32 %v2197, %v2277
      %v2279 = vpop.f32.mrf.mxu0
      %2280 = vdwg.mxu0
      %v2281 = vadd.f32 %v2273, %v2072
      %v2282 = vadd.f32 %v2278, %v2073
      %v2283 = vsel %vm705, %v2281, 0.0
      %2284 = vadd.xlane.f32.xlu0 %v2283
      %v2285 = vpop.xlane.xlu0 %2284
      %v2286 = vsel %vm2031, %v2282, 0.0
      %2287 = vadd.xlane.f32.xlu0 %v2286
      %v2288 = vpop.xlane.xlu0 %2287
      %v2289 = vmul.f32 %v2285, %v2035
      %v2290 = vmul.f32 %v2288, %v2035
      %v2291 = vsub.f32 %v2281, %v2289
      %v2292 = vsub.f32 %v2282, %v2290
      %v2293 = vmul.f32 %v2291, %v2291
      %v2294 = vmul.f32 %v2292, %v2292
      %v2295 = vsel %vm705, %v2293, 0.0
      %2296 = vadd.xlane.f32.xlu0 %v2295
      %v2297 = vpop.xlane.xlu0 %2296
      %v2298 = vsel %vm2031, %v2294, 0.0
      %2299 = vadd.xlane.f32.xlu0 %v2298
      %v2300 = vpop.xlane.xlu0 %2299
      %v2301 = vmul.f32 %v2297, %v2035
      %v2302 = vmul.f32 %v2300, %v2035
      %v2303 = vadd.f32 %v2301, 1e-06
      %v2304 = vadd.f32 %v2302, 1e-06
      %v2305 = vrsqrt.pop %v2303
      %v2306 = vrsqrt.pop %v2304
      %v2307 = vmul.f32 %v2291, %v2305
      %v2308 = vmul.f32 %v2292, %v2306
      %v2309 = vld [vmem:[%s18] sm:$0x1]
      %v2311 = vlaneseq
      %v2312 = vshrl.u32 %v2311, 7
      %v2313 = vsub.s32 0, %v2312
      %v2314 = vrot.slane %v2309, %v2313
      %v2316 = vmul.f32 %v2307, %v2314
      %v2317 = vmul.f32 %v2308, %v2314
      %v2318 = vld [vmem:[%s19] sm:$0x1]
      %v2320 = vlaneseq
      %v2321 = vshrl.u32 %v2320, 7
      %v2322 = vsub.s32 0, %v2321
      %v2323 = vrot.slane %v2318, %v2322
      %v2325 = vadd.f32 %v2316, %v2323
      %v2326 = vadd.f32 %v2317, %v2323
      %2327 = vst.msk [vmem:[%s684] sm:$0xff] %vm705, %v2325
      %2328 = vst.msk [vmem:[%s684 + $0x8] sm:$0x1] %vm2031, %v2326
      %p2329 = scmp.lt.s32.totalorder %s33, 1
      %s2330 = scalar_select %p2329, %s33, 1
      %s2331 = smul.addr %s2330, 2
      %s2332 = smul.addr %s2331, 8
      %s2333 = scalar_lea.vmem %s20, %s2332
      %p2334 = scmp.lt.s32.totalorder %s33, 1
      %s2335 = scalar_select %p2334, %s33, 1
      %s2336 = smul.addr %s2335, 8
      %s2337 = smul.addr %s2336, 8
      %s2338 = scalar_lea.vmem %s21, %s2337
      // Predicated region
      $region101: #{multi_scale_transformer_forward.1} parent=99 // pred_check
        %p2339 = pneg %p481
      $region102: #{multi_scale_transformer_forward.1} parent=99 // pred_check_branch
        %2341 = sbr.rel (%p2339) target = $region104
      $region103: #{multi_scale_transformer_forward.1} parent=99 // pred_region
        _
      $region104: #{multi_scale_transformer_forward.1} parent=99 // pred_fallthru
        _
      // Predicated region
      $region105: #{multi_scale_transformer_forward.1} parent=99 // pred_check
        %p2342 = pneg %p507
      $region106: #{multi_scale_transformer_forward.1} parent=99 // pred_check_branch
        %2344 = sbr.rel (%p2342) target = $region108
      $region107: #{multi_scale_transformer_forward.1} parent=99 // pred_region
        _
      $region108: #{multi_scale_transformer_forward.1} parent=99 // pred_fallthru
        _
    $region100: #{multi_scale_transformer_forward.1} parent=5 // pred_fallthru
      _
    %p2345 = scmp.le.s32.totalorder 2, %s28
    // Predicated region
    $region109: #{multi_scale_transformer_forward.1} parent=5 // pred_check
      %p2346 = pneg %p2345
    $region110: #{multi_scale_transformer_forward.1} parent=5 // pred_check_branch
      %2348 = sbr.rel (%p2346) target = $region112
    $region111: #{multi_scale_transformer_forward.1} parent=5 // pred_region
      %s2349 = ssub.s32 %s28, 2
      // Predicated region
      $region113: #{multi_scale_transformer_forward.1} parent=111 // pred_check
        %p2350 = pneg %p487
      $region114: #{multi_scale_transformer_forward.1} parent=111 // pred_check_branch
        %2352 = sbr.rel (%p2350) target = $region116
      $region115: #{multi_scale_transformer_forward.1} parent=111 // pred_region
        %p2353 = scmp.lt.s32.totalorder %s34, 1
        %s2354 = scalar_select %p2353, %s34, 1
        %s2355 = smul.addr %s2354, 2
        %s2356 = smul.addr %s2355, 8
        %s2357 = scalar_lea.vmem %s20, %s2356
      $region116: #{multi_scale_transformer_forward.1} parent=111 // pred_fallthru
        _
      // Predicated region
      $region117: #{multi_scale_transformer_forward.1} parent=111 // pred_check
        %p2358 = pneg %p513
      $region118: #{multi_scale_transformer_forward.1} parent=111 // pred_check_branch
        %2360 = sbr.rel (%p2358) target = $region120
      $region119: #{multi_scale_transformer_forward.1} parent=111 // pred_region
        %p2361 = scmp.lt.s32.totalorder %s34, 1
        %s2362 = scalar_select %p2361, %s34, 1
        %s2363 = smul.addr %s2362, 8
        %s2364 = smul.addr %s2363, 8
        %s2365 = scalar_lea.vmem %s21, %s2364
      $region120: #{multi_scale_transformer_forward.1} parent=111 // pred_fallthru
        _
    $region112: #{multi_scale_transformer_forward.1} parent=5 // pred_fallthru
      _
  $region6: #{multi_scale_transformer_forward.1} parent=0 // loop_footer
    %s32 = sadd.s32 1, %s28
  $region7: #{multi_scale_transformer_forward.1} parent=0 // loop_footer_branch
    %27 = sbr.rel target = $region3
  $region8: #{multi_scale_transformer_forward.1} parent=0 // loop_exit
    _

</llo_original>
